<compile_context>
chip_gen: v5e
topology: v5e:2x2
jax: 0.10.0
libtpu: 0.0.40
codegen_flags: <defaults>
</compile_context>

<pallas_src>
import functools

import jax
import jax.numpy as jnp
import numpy as np
from jax.experimental import pallas as pl
from jax.experimental.pallas import tpu as pltpu


def _round_up(v, m):
    return (v + m - 1) // m * m


def conv_module_kernel(xl_ref, xc_ref, xr_ref, w1_ref, b1_ref, wd_ref, bd_ref,
                       w2_ref, b2_ref, out_ref, glu_ref, *,
                       T, Tt, Cp, K, PAD, HALO):
    i = pl.program_id(1)
    H = Tt + 2 * HALO                                     # extended (halo) rows

    # ---- fused pointwise_conv1 (1x1 conv == matmul) + GLU on the halo slab --
    # One bf16 MXU matmul with N = 2*Cp lanes; f32 accumulation.
    x_ext = jnp.concatenate([xl_ref[0], xc_ref[0], xr_ref[0]], axis=0)  # (H, Cp) bf16
    h = jnp.dot(x_ext, w1_ref[...], preferred_element_type=jnp.float32) + b1_ref[...]
    a = h[:, :Cp]                                         # lane-aligned GLU split
    g = h[:, Cp:]
    sig = pl.reciprocal(1.0 + jnp.exp(-g), approx=True)   # sigmoid via EUP recip
    glu = a * sig                                         # (H, Cp) f32

    # Rows whose global time index is outside [0, T) must contribute zero to
    # the depthwise conv: this implements the conv zero-padding and also masks
    # the clamped edge-halo blocks and the Tceil tail fill.
    t = i * Tt - HALO + jax.lax.broadcasted_iota(jnp.int32, (H, Cp), 0)
    glu = jnp.where((t >= 0) & (t < T), glu, 0.0)

    # ---- depthwise conv (groups=C); BatchNorm folded into wd/bd -------------
    # Offset-0 aligned store of the whole halo slab; K shifted reads ride the
    # load path.  Scratch is bf16 on >=v6 chips (halves read traffic).
    glu_ref[...] = glu.astype(glu_ref.dtype)
    base = HALO - PAD
    accs = [jnp.zeros((Tt, Cp), jnp.float32) for _ in range(4)]
    for k in range(K):                                    # static K -> unrolled
        wk = wd_ref[pl.ds(k, 1), :]                       # (1, Cp) BN-scaled tap
        v = glu_ref[pl.ds(base + k, Tt), :]               # (Tt, Cp)
        accs[k % 4] = accs[k % 4] + v * wk                # 4 independent partials
    y = jnp.maximum(accs[0] + accs[1] + accs[2] + accs[3] + bd_ref[...], 0.0)

    # ---- pointwise_conv2 (1x1 conv == matmul), bf16 MXU / f32 acc -----------
    out = jnp.dot(y.astype(jnp.bfloat16), w2_ref[...],
                  preferred_element_type=jnp.float32) + b2_ref[...]
    out_ref[0] = out.astype(out_ref.dtype)


def convolution_module(x, params, *, kernel_size=15, eps=1e-5, max_time_tile=512):
    """x: (B, T, C) -> (B, T, C), matching the PyTorch module's I/O shapes."""
    B, T, C = x.shape
    K = kernel_size
    assert K % 2 == 1, "non-causal path requires odd kernel_size"
    PAD = (K - 1) // 2
    HALO = max(8, _round_up(PAD, 8))                 # sublane-aligned halo
    Cp = _round_up(C, 128)                           # lane-dense channel padding
    pc = Cp - C

    # Time tiling: nT tiles of Tt rows each (Tt % HALO == 0).
    nT = -(-T // max_time_tile)
    Tt = _round_up(-(-T // nT), HALO)
    Tceil = nT * Tt
    H = Tt + 2 * HALO

    (W1, B1, Wd, Bd, gamma, beta, mean, var, W2, B2) = params

    # ---- host-side parameter prep (fusion / BN folding / padding / casting) --
    w1a = jnp.pad(W1[:C].T, ((0, pc), (0, pc)))                        # GLU "a" half
    w1g = jnp.pad(W1[C:].T, ((0, pc), (0, pc)))                        # GLU gate half
    w1_cat = jnp.concatenate([w1a, w1g], axis=1).astype(jnp.bfloat16)  # (Cp, 2Cp)
    b1_cat = jnp.concatenate([jnp.pad(B1[:C], (0, pc)),
                              jnp.pad(B1[C:], (0, pc))])[None, :]      # (1, 2Cp) f32

    scale = gamma * jax.lax.rsqrt(var + eps)         # BatchNorm (inference) fold
    wd = jnp.pad((Wd * scale[:, None]).T, ((0, 0), (0, pc)))           # (K, Cp) f32
    bd = jnp.pad((Bd - mean) * scale + beta, (0, pc))[None, :]         # (1, Cp) f32

    w2 = jnp.pad(W2.T, ((0, pc), (0, pc))).astype(jnp.bfloat16)        # (Cp, Cp)
    b2 = jnp.pad(B2, (0, pc))[None, :]                                 # (1, Cp) f32

    # Skip the host pad/cast HBM pass when x already matches (bf16, aligned).
    x_p = x
    if pc or Tceil != T:
        x_p = jnp.pad(x_p, ((0, 0), (0, Tceil - T), (0, pc)))
    if x_p.dtype != jnp.bfloat16:
        x_p = x_p.astype(jnp.bfloat16)

    # Depthwise scratch dtype: bf16 where the VPU supports it (>= v6), else f32.
    kind = jax.devices()[0].device_kind.lower()
    scratch_dtype = jnp.float32 if ("v4" in kind or "v5" in kind) else jnp.bfloat16

    cpb = Tt // HALO                       # halo blocks per time tile
    last_halo_blk = Tceil // HALO - 1

    # VMEM budget: blocks + weights (worst-case double-buffered) + scratch +
    # in-kernel temporaries, with headroom, capped at 48 MiB (< v7x physical).
    out_bytes = np.dtype(x.dtype).itemsize
    wbytes = (Cp * 2 * Cp * 2 + 2 * Cp * 4 + K * Cp * 4 + Cp * 4 + Cp * Cp * 2 + Cp * 4)
    block_bytes = (2 * Tt * Cp * 2 + 4 * HALO * Cp * 2          # x blocks (x2 bufs)
                   + 2 * Tt * Cp * out_bytes                    # out blocks (x2 bufs)
                   + 2 * wbytes                                 # weights (worst case)
                   + H * Cp * np.dtype(scratch_dtype).itemsize) # glu scratch
    tmp_bytes = (H * 2 * Cp + H * Cp + 6 * Tt * Cp) * 4         # kernel temporaries
    vmem_limit = int(min(max(block_bytes + tmp_bytes + (2 << 20), 8 << 20), 48 << 20))

    flops = B * nT * (2 * H * Cp * 2 * Cp + 2 * Tt * Cp * Cp + 2 * Tt * Cp * K)
    bytes_accessed = B * nT * (H * Cp * 2 + Tt * Cp * out_bytes) + wbytes

    kern = functools.partial(conv_module_kernel,
                             T=T, Tt=Tt, Cp=Cp, K=K, PAD=PAD, HALO=HALO)

    def _build_and_run(single_buffer_weights):
        def _const_spec(shape):
            idx = lambda b, i, _n=len(shape): (0,) * _n
            if single_buffer_weights:
                try:
                    # never-changing operands: no need for double buffering
                    return pl.BlockSpec(shape, idx, pipeline_mode=pl.Buffered(1))
                except (TypeError, AttributeError):
                    pass
            return pl.BlockSpec(shape, idx)

        in_specs = [
            # left halo: 8 rows just before the tile (clamped, masked at t < 0)
            pl.BlockSpec((1, HALO, Cp),
                         lambda b, i: (b, jnp.maximum(i * cpb - 1, 0), 0)),
            # center tile
            pl.BlockSpec((1, Tt, Cp), lambda b, i: (b, i, 0)),
            # right halo: 8 rows just after the tile (clamped, masked at t >= T)
            pl.BlockSpec((1, HALO, Cp),
                         lambda b, i: (b, jnp.minimum((i + 1) * cpb, last_halo_blk), 0)),
            _const_spec((Cp, 2 * Cp)), _const_spec((1, 2 * Cp)),   # fused pw1
            _const_spec((K, Cp)), _const_spec((1, Cp)),            # depthwise (BN folded)
            _const_spec((Cp, Cp)), _const_spec((1, Cp)),           # pw2
        ]

        grid_spec = pltpu.PrefetchScalarGridSpec(
            num_scalar_prefetch=0,
            grid=(B, nT),
            in_specs=in_specs,
            out_specs=pl.BlockSpec((1, Tt, Cp), lambda b, i: (b, i, 0)),
            scratch_shapes=[pltpu.VMEM((H, Cp), scratch_dtype)],
        )

        return pl.pallas_call(
            kern,
            out_shape=jax.ShapeDtypeStruct((B, Tceil, Cp), x.dtype),
            grid_spec=grid_spec,
            compiler_params=pltpu.CompilerParams(
                dimension_semantics=("parallel", "parallel"),
                vmem_limit_bytes=vmem_limit),
            cost_estimate=pl.CostEstimate(flops=flops,
                                          transcendentals=B * nT * H * Cp,
                                          bytes_accessed=bytes_accessed),
        )(x_p, x_p, x_p, w1_cat, b1_cat, wd, bd, w2, b2)

    try:
        out = _build_and_run(True)
    except Exception:
        # Fallback for JAX versions where single-buffered pipeline_mode is not
        # supported at lowering time; identical semantics, default buffering.
        out = _build_and_run(False)

    return out[:, :T, :C]


def init_params(key, C, K):
    """Deterministic synthetic parameters in PyTorch shapes (weights squeezed)."""
    ks = jax.random.split(key, 10)
    s = 0.1
    W1 = jax.random.normal(ks[0], (2 * C, C), jnp.float32) * s   # pw1.weight (2C,C,1)
    B1 = jax.random.normal(ks[1], (2 * C,), jnp.float32) * s     # pw1.bias
    Wd = jax.random.normal(ks[2], (C, K), jnp.float32) * s       # dw.weight (C,1,K)
    Bd = jax.random.normal(ks[3], (C,), jnp.float32) * s         # dw.bias
    gamma = 1.0 + 0.1 * jax.random.normal(ks[4], (C,), jnp.float32)
    beta = 0.1 * jax.random.normal(ks[5], (C,), jnp.float32)
    mean = 0.1 * jax.random.normal(ks[6], (C,), jnp.float32)
    var = 1.0 + 0.1 * jnp.abs(jax.random.normal(ks[7], (C,), jnp.float32))
    W2 = jax.random.normal(ks[8], (C, C), jnp.float32) * s       # pw2.weight (C,C,1)
    B2 = jax.random.normal(ks[9], (C,), jnp.float32) * s         # pw2.bias
    return (W1, B1, Wd, Bd, gamma, beta, mean, var, W2, B2)


def reference(x, params, *, kernel_size=15, eps=1e-5):
    """Pure-JAX (f32) mirror of the PyTorch forward, channels-last."""
    (W1, B1, Wd, Bd, gamma, beta, mean, var, W2, B2) = params
    B, T, C = x.shape
    K = kernel_size
    PAD = (K - 1) // 2
    a = x @ W1[:C].T + B1[:C]
    g = x @ W1[C:].T + B1[C:]
    glu = a * jax.nn.sigmoid(g)
    padded = jnp.pad(glu, ((0, 0), (PAD, PAD), (0, 0)))
    acc = jnp.zeros_like(glu)
    for k in range(K):
        acc = acc + padded[:, k:k + T, :] * Wd[:, k][None, None, :]
    acc = acc + Bd[None, None, :]
    y = (acc - mean) * jax.lax.rsqrt(var + eps) * gamma + beta
    y = jnp.maximum(y, 0.0)
    return y @ W2.T + B2


if __name__ == "__main__":
    B, T, C, K = 2, 16, 32, 15
    key = jax.random.PRNGKey(0)
    kx, kp = jax.random.split(key)
    x = jax.random.normal(kx, (B, T, C), jnp.float32)   # (#batch, time, channels)
    params = init_params(kp, C, K)

    out = jax.block_until_ready(convolution_module(x, params, kernel_size=K))
    ref = reference(x, params, kernel_size=K)

    # bf16 MXU inputs / approx-recip sigmoid (f32 accumulation) => loosened tol.
    np.testing.assert_allclose(np.asarray(out, dtype=np.float32),
                               np.asarray(ref, dtype=np.float32),
                               rtol=3e-2, atol=3e-2)
    print("KERNEL_OK")
</pallas_src>

<mosaic_0001>
module attributes {stable_mosaic.version = 11 : i64} {
  func.func @conv_module_kernel(%arg0: i32, %arg1: i32, %arg2: memref<1x8x128xbf16, #tpu.memory_space<vmem>>, %arg3: memref<1x16x128xbf16, #tpu.memory_space<vmem>>, %arg4: memref<1x8x128xbf16, #tpu.memory_space<vmem>>, %arg5: memref<128x256xbf16, #tpu.memory_space<vmem>>, %arg6: memref<1x256xf32, #tpu.memory_space<vmem>>, %arg7: memref<15x128xf32, #tpu.memory_space<vmem>>, %arg8: memref<1x128xf32, #tpu.memory_space<vmem>>, %arg9: memref<128x128xbf16, #tpu.memory_space<vmem>>, %arg10: memref<1x128xf32, #tpu.memory_space<vmem>>, %arg11: memref<1x16x128xf32, #tpu.memory_space<vmem>>, %arg12: memref<32x128xbf16, #tpu.memory_space<vmem>>) attributes {dimension_semantics = [#tpu.dimension_semantics<parallel>, #tpu.dimension_semantics<parallel>], iteration_bounds = array<i64: 2, 1>, scalar_prefetch = 0 : i64, scratch_operands = 1 : i64, tpu.core_type = #tpu.core_type<tc>, window_params = [{transform_indices = @transform_0, window_bounds = array<i64: 1, 8, 128>}, {transform_indices = @transform_1, window_bounds = array<i64: 1, 16, 128>}, {transform_indices = @transform_2, window_bounds = array<i64: 1, 8, 128>}, {pipeline_mode = #tpu.pipeline_mode<synchronous>, transform_indices = @transform_3, window_bounds = array<i64: 128, 256>}, {pipeline_mode = #tpu.pipeline_mode<synchronous>, transform_indices = @transform_4, window_bounds = array<i64: 1, 256>}, {pipeline_mode = #tpu.pipeline_mode<synchronous>, transform_indices = @transform_5, window_bounds = array<i64: 15, 128>}, {pipeline_mode = #tpu.pipeline_mode<synchronous>, transform_indices = @transform_6, window_bounds = array<i64: 1, 128>}, {pipeline_mode = #tpu.pipeline_mode<synchronous>, transform_indices = @transform_7, window_bounds = array<i64: 128, 128>}, {pipeline_mode = #tpu.pipeline_mode<synchronous>, transform_indices = @transform_8, window_bounds = array<i64: 1, 128>}, {transform_indices = @transform_9, window_bounds = array<i64: 1, 16, 128>}]} {
    %c0 = arith.constant 0 : index
    %c0_0 = arith.constant 0 : index
    %c0_1 = arith.constant 0 : index
    %0 = vector.load %arg2[%c0, %c0_0, %c0_1] : memref<1x8x128xbf16, #tpu.memory_space<vmem>>, vector<1x8x128xbf16>
    %1 = vector.shape_cast %0 : vector<1x8x128xbf16> to vector<8x128xbf16>
    %c0_2 = arith.constant 0 : index
    %c0_3 = arith.constant 0 : index
    %c0_4 = arith.constant 0 : index
    %2 = vector.load %arg3[%c0_2, %c0_3, %c0_4] : memref<1x16x128xbf16, #tpu.memory_space<vmem>>, vector<1x16x128xbf16>
    %3 = vector.shape_cast %2 : vector<1x16x128xbf16> to vector<16x128xbf16>
    %c0_5 = arith.constant 0 : index
    %c0_6 = arith.constant 0 : index
    %c0_7 = arith.constant 0 : index
    %4 = vector.load %arg4[%c0_5, %c0_6, %c0_7] : memref<1x8x128xbf16, #tpu.memory_space<vmem>>, vector<1x8x128xbf16>
    %5 = vector.shape_cast %4 : vector<1x8x128xbf16> to vector<8x128xbf16>
    %6 = tpu.concatenate %1, %3, %5 in 0 : vector<8x128xbf16>, vector<16x128xbf16>, vector<8x128xbf16> -> vector<32x128xbf16>
    %c0_8 = arith.constant 0 : index
    %c0_9 = arith.constant 0 : index
    %7 = vector.load %arg5[%c0_8, %c0_9] : memref<128x256xbf16, #tpu.memory_space<vmem>>, vector<128x256xbf16>
    %cst = arith.constant dense<0.000000e+00> : vector<32x256xf32>
    %8 = tpu.matmul %6, %7, %cst {dimension_numbers = #tpu.dot_dimension_numbers<[1], [0], [0], [1], [0, 0, 1, 1], [], []>} : vector<32x128xbf16>, vector<128x256xbf16>, vector<32x256xf32> -> vector<32x256xf32>
    %c0_10 = arith.constant 0 : index
    %c0_11 = arith.constant 0 : index
    %9 = vector.load %arg6[%c0_10, %c0_11] : memref<1x256xf32, #tpu.memory_space<vmem>>, vector<1x256xf32>
    %10 = vector.broadcast %9 : vector<1x256xf32> to vector<32x256xf32>
    %11 = arith.addf %8, %10 : vector<32x256xf32>
    %12 = vector.extract_strided_slice %11 {offsets = [0, 0], sizes = [32, 128], strides = [1, 1]} : vector<32x256xf32> to vector<32x128xf32>
    %13 = vector.extract_strided_slice %11 {offsets = [0, 128], sizes = [32, 128], strides = [1, 1]} : vector<32x256xf32> to vector<32x128xf32>
    %cst_12 = arith.constant 0.000000e+00 : f32
    %14 = vector.broadcast %cst_12 : f32 to vector<32x128xf32>
    %15 = arith.subf %14, %13 : vector<32x128xf32>
    %16 = math.exp %15 : vector<32x128xf32>
    %cst_13 = arith.constant 1.000000e+00 : f32
    %17 = vector.broadcast %cst_13 : f32 to vector<32x128xf32>
    %18 = arith.addf %17, %16 : vector<32x128xf32>
    %19 = tpu.reciprocal %18 {approx = true} : vector<32x128xf32> -> vector<32x128xf32>
    %20 = arith.mulf %12, %19 : vector<32x128xf32>
    %c16_i32 = arith.constant 16 : i32
    %21 = arith.muli %arg1, %c16_i32 : i32
    %c8_i32 = arith.constant 8 : i32
    %22 = arith.subi %21, %c8_i32 : i32
    %23 = tpu.iota {dimensions = array<i32: 0>} : vector<32x128xi32>
    %24 = vector.broadcast %22 : i32 to vector<32x128xi32>
    %25 = arith.addi %24, %23 : vector<32x128xi32>
    %c0_i32 = arith.constant 0 : i32
    %26 = vector.broadcast %c0_i32 : i32 to vector<32x128xi32>
    %27 = arith.cmpi sge, %25, %26 : vector<32x128xi32>
    %c16_i32_14 = arith.constant 16 : i32
    %28 = vector.broadcast %c16_i32_14 : i32 to vector<32x128xi32>
    %29 = arith.cmpi slt, %25, %28 : vector<32x128xi32>
    %30 = arith.andi %27, %29 : vector<32x128xi1>
    %cst_15 = arith.constant 0.000000e+00 : f32
    %31 = vector.broadcast %cst_15 : f32 to vector<32x128xf32>
    %32 = arith.select %30, %20, %31 : vector<32x128xi1>, vector<32x128xf32>
    %33 = arith.truncf %32 : vector<32x128xf32> to vector<32x128xbf16>
    %c0_16 = arith.constant 0 : index
    %c0_17 = arith.constant 0 : index
    %34 = vector.load %arg12[%c0_16, %c0_17] : memref<32x128xbf16, #tpu.memory_space<vmem>>, vector<32x128xbf16>
    tpu.vector_store %arg12[%c0_16, %c0_17], %33 {strides = array<i32>} : memref<32x128xbf16, #tpu.memory_space<vmem>>, vector<32x128xbf16>,
    %cst_18 = arith.constant 0.000000e+00 : f32
    %35 = vector.broadcast %cst_18 : f32 to vector<16x128xf32>
    %cst_19 = arith.constant 0.000000e+00 : f32
    %36 = vector.broadcast %cst_19 : f32 to vector<16x128xf32>
    %cst_20 = arith.constant 0.000000e+00 : f32
    %37 = vector.broadcast %cst_20 : f32 to vector<16x128xf32>
    %cst_21 = arith.constant 0.000000e+00 : f32
    %38 = vector.broadcast %cst_21 : f32 to vector<16x128xf32>
    %c0_22 = arith.constant 0 : index
    %c0_23 = arith.constant 0 : index
    %39 = vector.load %arg7[%c0_22, %c0_23] : memref<15x128xf32, #tpu.memory_space<vmem>>, vector<1x128xf32>
    %c1 = arith.constant 1 : index
    %c0_24 = arith.constant 0 : index
    %40 = vector.load %arg12[%c1, %c0_24] : memref<32x128xbf16, #tpu.memory_space<vmem>>, vector<16x128xbf16>
    %41 = arith.extf %40 : vector<16x128xbf16> to vector<16x128xf32>
    %42 = vector.broadcast %39 : vector<1x128xf32> to vector<16x128xf32>
    %43 = arith.mulf %41, %42 : vector<16x128xf32>
    %44 = arith.addf %35, %43 : vector<16x128xf32>
    %c1_25 = arith.constant 1 : index
    %c0_26 = arith.constant 0 : index
    %45 = vector.load %arg7[%c1_25, %c0_26] : memref<15x128xf32, #tpu.memory_space<vmem>>, vector<1x128xf32>
    %c2 = arith.constant 2 : index
    %c0_27 = arith.constant 0 : index
    %46 = vector.load %arg12[%c2, %c0_27] : memref<32x128xbf16, #tpu.memory_space<vmem>>, vector<16x128xbf16>
    %47 = arith.extf %46 : vector<16x128xbf16> to vector<16x128xf32>
    %48 = vector.broadcast %45 : vector<1x128xf32> to vector<16x128xf32>
    %49 = arith.mulf %47, %48 : vector<16x128xf32>
    %50 = arith.addf %36, %49 : vector<16x128xf32>
    %c2_28 = arith.constant 2 : index
    %c0_29 = arith.constant 0 : index
    %51 = vector.load %arg7[%c2_28, %c0_29] : memref<15x128xf32, #tpu.memory_space<vmem>>, vector<1x128xf32>
    %c3 = arith.constant 3 : index
    %c0_30 = arith.constant 0 : index
    %52 = vector.load %arg12[%c3, %c0_30] : memref<32x128xbf16, #tpu.memory_space<vmem>>, vector<16x128xbf16>
    %53 = arith.extf %52 : vector<16x128xbf16> to vector<16x128xf32>
    %54 = vector.broadcast %51 : vector<1x128xf32> to vector<16x128xf32>
    %55 = arith.mulf %53, %54 : vector<16x128xf32>
    %56 = arith.addf %37, %55 : vector<16x128xf32>
    %c3_31 = arith.constant 3 : index
    %c0_32 = arith.constant 0 : index
    %57 = vector.load %arg7[%c3_31, %c0_32] : memref<15x128xf32, #tpu.memory_space<vmem>>, vector<1x128xf32>
    %c4 = arith.constant 4 : index
    %c0_33 = arith.constant 0 : index
    %58 = vector.load %arg12[%c4, %c0_33] : memref<32x128xbf16, #tpu.memory_space<vmem>>, vector<16x128xbf16>
    %59 = arith.extf %58 : vector<16x128xbf16> to vector<16x128xf32>
    %60 = vector.broadcast %57 : vector<1x128xf32> to vector<16x128xf32>
    %61 = arith.mulf %59, %60 : vector<16x128xf32>
    %62 = arith.addf %38, %61 : vector<16x128xf32>
    %c4_34 = arith.constant 4 : index
    %c0_35 = arith.constant 0 : index
    %63 = vector.load %arg7[%c4_34, %c0_35] : memref<15x128xf32, #tpu.memory_space<vmem>>, vector<1x128xf32>
    %c5 = arith.constant 5 : index
    %c0_36 = arith.constant 0 : index
    %64 = vector.load %arg12[%c5, %c0_36] : memref<32x128xbf16, #tpu.memory_space<vmem>>, vector<16x128xbf16>
    %65 = arith.extf %64 : vector<16x128xbf16> to vector<16x128xf32>
    %66 = vector.broadcast %63 : vector<1x128xf32> to vector<16x128xf32>
    %67 = arith.mulf %65, %66 : vector<16x128xf32>
    %68 = arith.addf %44, %67 : vector<16x128xf32>
    %c5_37 = arith.constant 5 : index
    %c0_38 = arith.constant 0 : index
    %69 = vector.load %arg7[%c5_37, %c0_38] : memref<15x128xf32, #tpu.memory_space<vmem>>, vector<1x128xf32>
    %c6 = arith.constant 6 : index
    %c0_39 = arith.constant 0 : index
    %70 = vector.load %arg12[%c6, %c0_39] : memref<32x128xbf16, #tpu.memory_space<vmem>>, vector<16x128xbf16>
    %71 = arith.extf %70 : vector<16x128xbf16> to vector<16x128xf32>
    %72 = vector.broadcast %69 : vector<1x128xf32> to vector<16x128xf32>
    %73 = arith.mulf %71, %72 : vector<16x128xf32>
    %74 = arith.addf %50, %73 : vector<16x128xf32>
    %c6_40 = arith.constant 6 : index
    %c0_41 = arith.constant 0 : index
    %75 = vector.load %arg7[%c6_40, %c0_41] : memref<15x128xf32, #tpu.memory_space<vmem>>, vector<1x128xf32>
    %c7 = arith.constant 7 : index
    %c0_42 = arith.constant 0 : index
    %76 = vector.load %arg12[%c7, %c0_42] : memref<32x128xbf16, #tpu.memory_space<vmem>>, vector<16x128xbf16>
    %77 = arith.extf %76 : vector<16x128xbf16> to vector<16x128xf32>
    %78 = vector.broadcast %75 : vector<1x128xf32> to vector<16x128xf32>
    %79 = arith.mulf %77, %78 : vector<16x128xf32>
    %80 = arith.addf %56, %79 : vector<16x128xf32>
    %c7_43 = arith.constant 7 : index
    %c0_44 = arith.constant 0 : index
    %81 = vector.load %arg7[%c7_43, %c0_44] : memref<15x128xf32, #tpu.memory_space<vmem>>, vector<1x128xf32>
    %c8 = arith.constant 8 : index
    %c0_45 = arith.constant 0 : index
    %82 = vector.load %arg12[%c8, %c0_45] : memref<32x128xbf16, #tpu.memory_space<vmem>>, vector<16x128xbf16>
    %83 = arith.extf %82 : vector<16x128xbf16> to vector<16x128xf32>
    %84 = vector.broadcast %81 : vector<1x128xf32> to vector<16x128xf32>
    %85 = arith.mulf %83, %84 : vector<16x128xf32>
    %86 = arith.addf %62, %85 : vector<16x128xf32>
    %c8_46 = arith.constant 8 : index
    %c0_47 = arith.constant 0 : index
    %87 = vector.load %arg7[%c8_46, %c0_47] : memref<15x128xf32, #tpu.memory_space<vmem>>, vector<1x128xf32>
    %c9 = arith.constant 9 : index
    %c0_48 = arith.constant 0 : index
    %88 = vector.load %arg12[%c9, %c0_48] : memref<32x128xbf16, #tpu.memory_space<vmem>>, vector<16x128xbf16>
    %89 = arith.extf %88 : vector<16x128xbf16> to vector<16x128xf32>
    %90 = vector.broadcast %87 : vector<1x128xf32> to vector<16x128xf32>
    %91 = arith.mulf %89, %90 : vector<16x128xf32>
    %92 = arith.addf %68, %91 : vector<16x128xf32>
    %c9_49 = arith.constant 9 : index
    %c0_50 = arith.constant 0 : index
    %93 = vector.load %arg7[%c9_49, %c0_50] : memref<15x128xf32, #tpu.memory_space<vmem>>, vector<1x128xf32>
    %c10 = arith.constant 10 : index
    %c0_51 = arith.constant 0 : index
    %94 = vector.load %arg12[%c10, %c0_51] : memref<32x128xbf16, #tpu.memory_space<vmem>>, vector<16x128xbf16>
    %95 = arith.extf %94 : vector<16x128xbf16> to vector<16x128xf32>
    %96 = vector.broadcast %93 : vector<1x128xf32> to vector<16x128xf32>
    %97 = arith.mulf %95, %96 : vector<16x128xf32>
    %98 = arith.addf %74, %97 : vector<16x128xf32>
    %c10_52 = arith.constant 10 : index
    %c0_53 = arith.constant 0 : index
    %99 = vector.load %arg7[%c10_52, %c0_53] : memref<15x128xf32, #tpu.memory_space<vmem>>, vector<1x128xf32>
    %c11 = arith.constant 11 : index
    %c0_54 = arith.constant 0 : index
    %100 = vector.load %arg12[%c11, %c0_54] : memref<32x128xbf16, #tpu.memory_space<vmem>>, vector<16x128xbf16>
    %101 = arith.extf %100 : vector<16x128xbf16> to vector<16x128xf32>
    %102 = vector.broadcast %99 : vector<1x128xf32> to vector<16x128xf32>
    %103 = arith.mulf %101, %102 : vector<16x128xf32>
    %104 = arith.addf %80, %103 : vector<16x128xf32>
    %c11_55 = arith.constant 11 : index
    %c0_56 = arith.constant 0 : index
    %105 = vector.load %arg7[%c11_55, %c0_56] : memref<15x128xf32, #tpu.memory_space<vmem>>, vector<1x128xf32>
    %c12 = arith.constant 12 : index
    %c0_57 = arith.constant 0 : index
    %106 = vector.load %arg12[%c12, %c0_57] : memref<32x128xbf16, #tpu.memory_space<vmem>>, vector<16x128xbf16>
    %107 = arith.extf %106 : vector<16x128xbf16> to vector<16x128xf32>
    %108 = vector.broadcast %105 : vector<1x128xf32> to vector<16x128xf32>
    %109 = arith.mulf %107, %108 : vector<16x128xf32>
    %110 = arith.addf %86, %109 : vector<16x128xf32>
    %c12_58 = arith.constant 12 : index
    %c0_59 = arith.constant 0 : index
    %111 = vector.load %arg7[%c12_58, %c0_59] : memref<15x128xf32, #tpu.memory_space<vmem>>, vector<1x128xf32>
    %c13 = arith.constant 13 : index
    %c0_60 = arith.constant 0 : index
    %112 = vector.load %arg12[%c13, %c0_60] : memref<32x128xbf16, #tpu.memory_space<vmem>>, vector<16x128xbf16>
    %113 = arith.extf %112 : vector<16x128xbf16> to vector<16x128xf32>
    %114 = vector.broadcast %111 : vector<1x128xf32> to vector<16x128xf32>
    %115 = arith.mulf %113, %114 : vector<16x128xf32>
    %116 = arith.addf %92, %115 : vector<16x128xf32>
    %c13_61 = arith.constant 13 : index
    %c0_62 = arith.constant 0 : index
    %117 = vector.load %arg7[%c13_61, %c0_62] : memref<15x128xf32, #tpu.memory_space<vmem>>, vector<1x128xf32>
    %c14 = arith.constant 14 : index
    %c0_63 = arith.constant 0 : index
    %118 = vector.load %arg12[%c14, %c0_63] : memref<32x128xbf16, #tpu.memory_space<vmem>>, vector<16x128xbf16>
    %119 = arith.extf %118 : vector<16x128xbf16> to vector<16x128xf32>
    %120 = vector.broadcast %117 : vector<1x128xf32> to vector<16x128xf32>
    %121 = arith.mulf %119, %120 : vector<16x128xf32>
    %122 = arith.addf %98, %121 : vector<16x128xf32>
    %c14_64 = arith.constant 14 : index
    %c0_65 = arith.constant 0 : index
    %123 = vector.load %arg7[%c14_64, %c0_65] : memref<15x128xf32, #tpu.memory_space<vmem>>, vector<1x128xf32>
    %c15 = arith.constant 15 : index
    %c0_66 = arith.constant 0 : index
    %124 = vector.load %arg12[%c15, %c0_66] : memref<32x128xbf16, #tpu.memory_space<vmem>>, vector<16x128xbf16>
    %125 = arith.extf %124 : vector<16x128xbf16> to vector<16x128xf32>
    %126 = vector.broadcast %123 : vector<1x128xf32> to vector<16x128xf32>
    %127 = arith.mulf %125, %126 : vector<16x128xf32>
    %128 = arith.addf %104, %127 : vector<16x128xf32>
    %129 = arith.addf %116, %122 : vector<16x128xf32>
    %130 = arith.addf %129, %128 : vector<16x128xf32>
    %131 = arith.addf %130, %110 : vector<16x128xf32>
    %c0_67 = arith.constant 0 : index
    %c0_68 = arith.constant 0 : index
    %132 = vector.load %arg8[%c0_67, %c0_68] : memref<1x128xf32, #tpu.memory_space<vmem>>, vector<1x128xf32>
    %133 = vector.broadcast %132 : vector<1x128xf32> to vector<16x128xf32>
    %134 = arith.addf %131, %133 : vector<16x128xf32>
    %cst_69 = arith.constant 0.000000e+00 : f32
    %135 = vector.broadcast %cst_69 : f32 to vector<16x128xf32>
    %136 = arith.maximumf %134, %135 : vector<16x128xf32>
    %137 = arith.truncf %136 : vector<16x128xf32> to vector<16x128xbf16>
    %c0_70 = arith.constant 0 : index
    %c0_71 = arith.constant 0 : index
    %138 = vector.load %arg9[%c0_70, %c0_71] : memref<128x128xbf16, #tpu.memory_space<vmem>>, vector<128x128xbf16>
    %cst_72 = arith.constant dense<0.000000e+00> : vector<16x128xf32>
    %139 = tpu.matmul %137, %138, %cst_72 {dimension_numbers = #tpu.dot_dimension_numbers<[1], [0], [0], [1], [0, 0, 1, 1], [], []>} : vector<16x128xbf16>, vector<128x128xbf16>, vector<16x128xf32> -> vector<16x128xf32>
    %c0_73 = arith.constant 0 : index
    %c0_74 = arith.constant 0 : index
    %140 = vector.load %arg10[%c0_73, %c0_74] : memref<1x128xf32, #tpu.memory_space<vmem>>, vector<1x128xf32>
    %141 = vector.broadcast %140 : vector<1x128xf32> to vector<16x128xf32>
    %142 = arith.addf %139, %141 : vector<16x128xf32>
    %c0_75 = arith.constant 0 : index
    %c0_76 = arith.constant 0 : index
    %c0_77 = arith.constant 0 : index
    %143 = vector.load %arg11[%c0_75, %c0_76, %c0_77] : memref<1x16x128xf32, #tpu.memory_space<vmem>>, vector<1x16x128xf32>
    %144 = vector.shape_cast %143 : vector<1x16x128xf32> to vector<16x128xf32>
    %145 = vector.shape_cast %142 : vector<16x128xf32> to vector<1x16x128xf32>
    tpu.vector_store %arg11[%c0_75, %c0_76, %c0_77], %145 {strides = array<i32>} : memref<1x16x128xf32, #tpu.memory_space<vmem>>, vector<1x16x128xf32>,
    return
  }
  func.func @transform_0(%arg0: i32, %arg1: i32) -> (i32, i32, i32) {
    %c2_i32 = arith.constant 2 : i32
    %0 = arith.muli %arg1, %c2_i32 : i32
    %c1_i32 = arith.constant 1 : i32
    %1 = arith.subi %0, %c1_i32 : i32
    %c0_i32 = arith.constant 0 : i32
    %2 = arith.maxsi %1, %c0_i32 : i32
    %c0_i32_0 = arith.constant 0 : i32
    %c0_i32_1 = arith.constant 0 : i32
    return %arg0, %2, %c0_i32_0 : i32, i32, i32
  }
  func.func @transform_1(%arg0: i32, %arg1: i32) -> (i32, i32, i32) {
    %c0_i32 = arith.constant 0 : i32
    %c0_i32_0 = arith.constant 0 : i32
    return %arg0, %arg1, %c0_i32 : i32, i32, i32
  }
  func.func @transform_2(%arg0: i32, %arg1: i32) -> (i32, i32, i32) {
    %c1_i32 = arith.constant 1 : i32
    %0 = arith.addi %arg1, %c1_i32 : i32
    %c2_i32 = arith.constant 2 : i32
    %1 = arith.muli %0, %c2_i32 : i32
    %c1_i32_0 = arith.constant 1 : i32
    %2 = arith.minsi %1, %c1_i32_0 : i32
    %c0_i32 = arith.constant 0 : i32
    %c0_i32_1 = arith.constant 0 : i32
    return %arg0, %2, %c0_i32 : i32, i32, i32
  }
  func.func @transform_3(%arg0: i32, %arg1: i32) -> (i32, i32) {
    %c0_i32 = arith.constant 0 : i32
    %c0_i32_0 = arith.constant 0 : i32
    %c0_i32_1 = arith.constant 0 : i32
    return %c0_i32, %c0_i32_0 : i32, i32
  }
  func.func @transform_4(%arg0: i32, %arg1: i32) -> (i32, i32) {
    %c0_i32 = arith.constant 0 : i32
    %c0_i32_0 = arith.constant 0 : i32
    %c0_i32_1 = arith.constant 0 : i32
    return %c0_i32, %c0_i32_0 : i32, i32
  }
  func.func @transform_5(%arg0: i32, %arg1: i32) -> (i32, i32) {
    %c0_i32 = arith.constant 0 : i32
    %c0_i32_0 = arith.constant 0 : i32
    %c0_i32_1 = arith.constant 0 : i32
    return %c0_i32, %c0_i32_0 : i32, i32
  }
  func.func @transform_6(%arg0: i32, %arg1: i32) -> (i32, i32) {
    %c0_i32 = arith.constant 0 : i32
    %c0_i32_0 = arith.constant 0 : i32
    %c0_i32_1 = arith.constant 0 : i32
    return %c0_i32, %c0_i32_0 : i32, i32
  }
  func.func @transform_7(%arg0: i32, %arg1: i32) -> (i32, i32) {
    %c0_i32 = arith.constant 0 : i32
    %c0_i32_0 = arith.constant 0 : i32
    %c0_i32_1 = arith.constant 0 : i32
    return %c0_i32, %c0_i32_0 : i32, i32
  }
  func.func @transform_8(%arg0: i32, %arg1: i32) -> (i32, i32) {
    %c0_i32 = arith.constant 0 : i32
    %c0_i32_0 = arith.constant 0 : i32
    %c0_i32_1 = arith.constant 0 : i32
    return %c0_i32, %c0_i32_0 : i32, i32
  }
  func.func @transform_9(%arg0: i32, %arg1: i32) -> (i32, i32, i32) {
    %c0_i32 = arith.constant 0 : i32
    %c0_i32_0 = arith.constant 0 : i32
    return %arg0, %arg1, %c0_i32 : i32, i32, i32
  }
}

module attributes {stable_mosaic.version = 11 : i64} {
  func.func @conv_module_kernel(%arg0: i32, %arg1: i32, %arg2: memref<1x8x128xbf16, #tpu.memory_space<vmem>>, %arg3: memref<1x16x128xbf16, #tpu.memory_space<vmem>>, %arg4: memref<1x8x128xbf16, #tpu.memory_space<vmem>>, %arg5: memref<128x256xbf16, #tpu.memory_space<vmem>>, %arg6: memref<1x256xf32, #tpu.memory_space<vmem>>, %arg7: memref<15x128xf32, #tpu.memory_space<vmem>>, %arg8: memref<1x128xf32, #tpu.memory_space<vmem>>, %arg9: memref<128x128xbf16, #tpu.memory_space<vmem>>, %arg10: memref<1x128xf32, #tpu.memory_space<vmem>>, %arg11: memref<1x16x128xf32, #tpu.memory_space<vmem>>, %arg12: memref<32x128xbf16, #tpu.memory_space<vmem>>) attributes {dimension_semantics = [#tpu.dimension_semantics<parallel>, #tpu.dimension_semantics<parallel>], iteration_bounds = array<i64: 2, 1>, scalar_prefetch = 0 : i64, scratch_operands = 1 : i64, tpu.core_type = #tpu.core_type<tc>, window_params = [{transform_indices = @transform_0, window_bounds = array<i64: 1, 8, 128>}, {transform_indices = @transform_1, window_bounds = array<i64: 1, 16, 128>}, {transform_indices = @transform_2, window_bounds = array<i64: 1, 8, 128>}, {pipeline_mode = #tpu.pipeline_mode<synchronous>, transform_indices = @transform_3, window_bounds = array<i64: 128, 256>}, {pipeline_mode = #tpu.pipeline_mode<synchronous>, transform_indices = @transform_4, window_bounds = array<i64: 1, 256>}, {pipeline_mode = #tpu.pipeline_mode<synchronous>, transform_indices = @transform_5, window_bounds = array<i64: 15, 128>}, {pipeline_mode = #tpu.pipeline_mode<synchronous>, transform_indices = @transform_6, window_bounds = array<i64: 1, 128>}, {pipeline_mode = #tpu.pipeline_mode<synchronous>, transform_indices = @transform_7, window_bounds = array<i64: 128, 128>}, {pipeline_mode = #tpu.pipeline_mode<synchronous>, transform_indices = @transform_8, window_bounds = array<i64: 1, 128>}, {transform_indices = @transform_9, window_bounds = array<i64: 1, 16, 128>}]} {
    %c0 = arith.constant 0 : index
    %c0_0 = arith.constant 0 : index
    %c0_1 = arith.constant 0 : index
    %0 = vector.load %arg2[%c0, %c0_0, %c0_1] : memref<1x8x128xbf16, #tpu.memory_space<vmem>>, vector<1x8x128xbf16>
    %1 = vector.shape_cast %0 : vector<1x8x128xbf16> to vector<8x128xbf16>
    %c0_2 = arith.constant 0 : index
    %c0_3 = arith.constant 0 : index
    %c0_4 = arith.constant 0 : index
    %2 = vector.load %arg3[%c0_2, %c0_3, %c0_4] : memref<1x16x128xbf16, #tpu.memory_space<vmem>>, vector<1x16x128xbf16>
    %3 = vector.shape_cast %2 : vector<1x16x128xbf16> to vector<16x128xbf16>
    %c0_5 = arith.constant 0 : index
    %c0_6 = arith.constant 0 : index
    %c0_7 = arith.constant 0 : index
    %4 = vector.load %arg4[%c0_5, %c0_6, %c0_7] : memref<1x8x128xbf16, #tpu.memory_space<vmem>>, vector<1x8x128xbf16>
    %5 = vector.shape_cast %4 : vector<1x8x128xbf16> to vector<8x128xbf16>
    %6 = tpu.concatenate %1, %3, %5 in 0 : vector<8x128xbf16>, vector<16x128xbf16>, vector<8x128xbf16> -> vector<32x128xbf16>
    %c0_8 = arith.constant 0 : index
    %c0_9 = arith.constant 0 : index
    %7 = vector.load %arg5[%c0_8, %c0_9] : memref<128x256xbf16, #tpu.memory_space<vmem>>, vector<128x256xbf16>
    %cst = arith.constant dense<0.000000e+00> : vector<32x256xf32>
    %8 = tpu.matmul %6, %7, %cst {dimension_numbers = #tpu.dot_dimension_numbers<[1], [0], [0], [1], [0, 0, 1, 1], [], []>} : vector<32x128xbf16>, vector<128x256xbf16>, vector<32x256xf32> -> vector<32x256xf32>
    %c0_10 = arith.constant 0 : index
    %c0_11 = arith.constant 0 : index
    %9 = vector.load %arg6[%c0_10, %c0_11] : memref<1x256xf32, #tpu.memory_space<vmem>>, vector<1x256xf32>
    %10 = vector.broadcast %9 : vector<1x256xf32> to vector<32x256xf32>
    %11 = arith.addf %8, %10 : vector<32x256xf32>
    %12 = vector.extract_strided_slice %11 {offsets = [0, 0], sizes = [32, 128], strides = [1, 1]} : vector<32x256xf32> to vector<32x128xf32>
    %13 = vector.extract_strided_slice %11 {offsets = [0, 128], sizes = [32, 128], strides = [1, 1]} : vector<32x256xf32> to vector<32x128xf32>
    %cst_12 = arith.constant 0.000000e+00 : f32
    %14 = vector.broadcast %cst_12 : f32 to vector<32x128xf32>
    %15 = arith.subf %14, %13 : vector<32x128xf32>
    %16 = math.exp %15 : vector<32x128xf32>
    %cst_13 = arith.constant 1.000000e+00 : f32
    %17 = vector.broadcast %cst_13 : f32 to vector<32x128xf32>
    %18 = arith.addf %17, %16 : vector<32x128xf32>
    %19 = tpu.reciprocal %18 {approx = true} : vector<32x128xf32> -> vector<32x128xf32>
    %20 = arith.mulf %12, %19 : vector<32x128xf32>
    %c16_i32 = arith.constant 16 : i32
    %21 = arith.muli %arg1, %c16_i32 : i32
    %c8_i32 = arith.constant 8 : i32
    %22 = arith.subi %21, %c8_i32 : i32
    %23 = tpu.iota {dimensions = array<i32: 0>} : vector<32x128xi32>
    %24 = vector.broadcast %22 : i32 to vector<32x128xi32>
    %25 = arith.addi %24, %23 : vector<32x128xi32>
    %c0_i32 = arith.constant 0 : i32
    %26 = vector.broadcast %c0_i32 : i32 to vector<32x128xi32>
    %27 = arith.cmpi sge, %25, %26 : vector<32x128xi32>
    %c16_i32_14 = arith.constant 16 : i32
    %28 = vector.broadcast %c16_i32_14 : i32 to vector<32x128xi32>
    %29 = arith.cmpi slt, %25, %28 : vector<32x128xi32>
    %30 = arith.andi %27, %29 : vector<32x128xi1>
    %cst_15 = arith.constant 0.000000e+00 : f32
    %31 = vector.broadcast %cst_15 : f32 to vector<32x128xf32>
    %32 = arith.select %30, %20, %31 : vector<32x128xi1>, vector<32x128xf32>
    %33 = arith.truncf %32 : vector<32x128xf32> to vector<32x128xbf16>
    %c0_16 = arith.constant 0 : index
    %c0_17 = arith.constant 0 : index
    %34 = vector.load %arg12[%c0_16, %c0_17] : memref<32x128xbf16, #tpu.memory_space<vmem>>, vector<32x128xbf16>
    tpu.vector_store %arg12[%c0_16, %c0_17], %33 {strides = array<i32>} : memref<32x128xbf16, #tpu.memory_space<vmem>>, vector<32x128xbf16>,
    %cst_18 = arith.constant 0.000000e+00 : f32
    %35 = vector.broadcast %cst_18 : f32 to vector<16x128xf32>
    %cst_19 = arith.constant 0.000000e+00 : f32
    %36 = vector.broadcast %cst_19 : f32 to vector<16x128xf32>
    %cst_20 = arith.constant 0.000000e+00 : f32
    %37 = vector.broadcast %cst_20 : f32 to vector<16x128xf32>
    %cst_21 = arith.constant 0.000000e+00 : f32
    %38 = vector.broadcast %cst_21 : f32 to vector<16x128xf32>
    %c0_22 = arith.constant 0 : index
    %c0_23 = arith.constant 0 : index
    %39 = vector.load %arg7[%c0_22, %c0_23] : memref<15x128xf32, #tpu.memory_space<vmem>>, vector<1x128xf32>
    %c1 = arith.constant 1 : index
    %c0_24 = arith.constant 0 : index
    %40 = vector.load %arg12[%c1, %c0_24] : memref<32x128xbf16, #tpu.memory_space<vmem>>, vector<16x128xbf16>
    %41 = arith.extf %40 : vector<16x128xbf16> to vector<16x128xf32>
    %42 = vector.broadcast %39 : vector<1x128xf32> to vector<16x128xf32>
    %43 = arith.mulf %41, %42 : vector<16x128xf32>
    %44 = arith.addf %35, %43 : vector<16x128xf32>
    %c1_25 = arith.constant 1 : index
    %c0_26 = arith.constant 0 : index
    %45 = vector.load %arg7[%c1_25, %c0_26] : memref<15x128xf32, #tpu.memory_space<vmem>>, vector<1x128xf32>
    %c2 = arith.constant 2 : index
    %c0_27 = arith.constant 0 : index
    %46 = vector.load %arg12[%c2, %c0_27] : memref<32x128xbf16, #tpu.memory_space<vmem>>, vector<16x128xbf16>
    %47 = arith.extf %46 : vector<16x128xbf16> to vector<16x128xf32>
    %48 = vector.broadcast %45 : vector<1x128xf32> to vector<16x128xf32>
    %49 = arith.mulf %47, %48 : vector<16x128xf32>
    %50 = arith.addf %36, %49 : vector<16x128xf32>
    %c2_28 = arith.constant 2 : index
    %c0_29 = arith.constant 0 : index
    %51 = vector.load %arg7[%c2_28, %c0_29] : memref<15x128xf32, #tpu.memory_space<vmem>>, vector<1x128xf32>
    %c3 = arith.constant 3 : index
    %c0_30 = arith.constant 0 : index
    %52 = vector.load %arg12[%c3, %c0_30] : memref<32x128xbf16, #tpu.memory_space<vmem>>, vector<16x128xbf16>
    %53 = arith.extf %52 : vector<16x128xbf16> to vector<16x128xf32>
    %54 = vector.broadcast %51 : vector<1x128xf32> to vector<16x128xf32>
    %55 = arith.mulf %53, %54 : vector<16x128xf32>
    %56 = arith.addf %37, %55 : vector<16x128xf32>
    %c3_31 = arith.constant 3 : index
    %c0_32 = arith.constant 0 : index
    %57 = vector.load %arg7[%c3_31, %c0_32] : memref<15x128xf32, #tpu.memory_space<vmem>>, vector<1x128xf32>
    %c4 = arith.constant 4 : index
    %c0_33 = arith.constant 0 : index
    %58 = vector.load %arg12[%c4, %c0_33] : memref<32x128xbf16, #tpu.memory_space<vmem>>, vector<16x128xbf16>
    %59 = arith.extf %58 : vector<16x128xbf16> to vector<16x128xf32>
    %60 = vector.broadcast %57 : vector<1x128xf32> to vector<16x128xf32>
    %61 = arith.mulf %59, %60 : vector<16x128xf32>
    %62 = arith.addf %38, %61 : vector<16x128xf32>
    %c4_34 = arith.constant 4 : index
    %c0_35 = arith.constant 0 : index
    %63 = vector.load %arg7[%c4_34, %c0_35] : memref<15x128xf32, #tpu.memory_space<vmem>>, vector<1x128xf32>
    %c5 = arith.constant 5 : index
    %c0_36 = arith.constant 0 : index
    %64 = vector.load %arg12[%c5, %c0_36] : memref<32x128xbf16, #tpu.memory_space<vmem>>, vector<16x128xbf16>
    %65 = arith.extf %64 : vector<16x128xbf16> to vector<16x128xf32>
    %66 = vector.broadcast %63 : vector<1x128xf32> to vector<16x128xf32>
    %67 = arith.mulf %65, %66 : vector<16x128xf32>
    %68 = arith.addf %44, %67 : vector<16x128xf32>
    %c5_37 = arith.constant 5 : index
    %c0_38 = arith.constant 0 : index
    %69 = vector.load %arg7[%c5_37, %c0_38] : memref<15x128xf32, #tpu.memory_space<vmem>>, vector<1x128xf32>
    %c6 = arith.constant 6 : index
    %c0_39 = arith.constant 0 : index
    %70 = vector.load %arg12[%c6, %c0_39] : memref<32x128xbf16, #tpu.memory_space<vmem>>, vector<16x128xbf16>
    %71 = arith.extf %70 : vector<16x128xbf16> to vector<16x128xf32>
    %72 = vector.broadcast %69 : vector<1x128xf32> to vector<16x128xf32>
    %73 = arith.mulf %71, %72 : vector<16x128xf32>
    %74 = arith.addf %50, %73 : vector<16x128xf32>
    %c6_40 = arith.constant 6 : index
    %c0_41 = arith.constant 0 : index
    %75 = vector.load %arg7[%c6_40, %c0_41] : memref<15x128xf32, #tpu.memory_space<vmem>>, vector<1x128xf32>
    %c7 = arith.constant 7 : index
    %c0_42 = arith.constant 0 : index
    %76 = vector.load %arg12[%c7, %c0_42] : memref<32x128xbf16, #tpu.memory_space<vmem>>, vector<16x128xbf16>
    %77 = arith.extf %76 : vector<16x128xbf16> to vector<16x128xf32>
    %78 = vector.broadcast %75 : vector<1x128xf32> to vector<16x128xf32>
    %79 = arith.mulf %77, %78 : vector<16x128xf32>
    %80 = arith.addf %56, %79 : vector<16x128xf32>
    %c7_43 = arith.constant 7 : index
    %c0_44 = arith.constant 0 : index
    %81 = vector.load %arg7[%c7_43, %c0_44] : memref<15x128xf32, #tpu.memory_space<vmem>>, vector<1x128xf32>
    %c8 = arith.constant 8 : index
    %c0_45 = arith.constant 0 : index
    %82 = vector.load %arg12[%c8, %c0_45] : memref<32x128xbf16, #tpu.memory_space<vmem>>, vector<16x128xbf16>
    %83 = arith.extf %82 : vector<16x128xbf16> to vector<16x128xf32>
    %84 = vector.broadcast %81 : vector<1x128xf32> to vector<16x128xf32>
    %85 = arith.mulf %83, %84 : vector<16x128xf32>
    %86 = arith.addf %62, %85 : vector<16x128xf32>
    %c8_46 = arith.constant 8 : index
    %c0_47 = arith.constant 0 : index
    %87 = vector.load %arg7[%c8_46, %c0_47] : memref<15x128xf32, #tpu.memory_space<vmem>>, vector<1x128xf32>
    %c9 = arith.constant 9 : index
    %c0_48 = arith.constant 0 : index
    %88 = vector.load %arg12[%c9, %c0_48] : memref<32x128xbf16, #tpu.memory_space<vmem>>, vector<16x128xbf16>
    %89 = arith.extf %88 : vector<16x128xbf16> to vector<16x128xf32>
    %90 = vector.broadcast %87 : vector<1x128xf32> to vector<16x128xf32>
    %91 = arith.mulf %89, %90 : vector<16x128xf32>
    %92 = arith.addf %68, %91 : vector<16x128xf32>
    %c9_49 = arith.constant 9 : index
    %c0_50 = arith.constant 0 : index
    %93 = vector.load %arg7[%c9_49, %c0_50] : memref<15x128xf32, #tpu.memory_space<vmem>>, vector<1x128xf32>
    %c10 = arith.constant 10 : index
    %c0_51 = arith.constant 0 : index
    %94 = vector.load %arg12[%c10, %c0_51] : memref<32x128xbf16, #tpu.memory_space<vmem>>, vector<16x128xbf16>
    %95 = arith.extf %94 : vector<16x128xbf16> to vector<16x128xf32>
    %96 = vector.broadcast %93 : vector<1x128xf32> to vector<16x128xf32>
    %97 = arith.mulf %95, %96 : vector<16x128xf32>
    %98 = arith.addf %74, %97 : vector<16x128xf32>
    %c10_52 = arith.constant 10 : index
    %c0_53 = arith.constant 0 : index
    %99 = vector.load %arg7[%c10_52, %c0_53] : memref<15x128xf32, #tpu.memory_space<vmem>>, vector<1x128xf32>
    %c11 = arith.constant 11 : index
    %c0_54 = arith.constant 0 : index
    %100 = vector.load %arg12[%c11, %c0_54] : memref<32x128xbf16, #tpu.memory_space<vmem>>, vector<16x128xbf16>
    %101 = arith.extf %100 : vector<16x128xbf16> to vector<16x128xf32>
    %102 = vector.broadcast %99 : vector<1x128xf32> to vector<16x128xf32>
    %103 = arith.mulf %101, %102 : vector<16x128xf32>
    %104 = arith.addf %80, %103 : vector<16x128xf32>
    %c11_55 = arith.constant 11 : index
    %c0_56 = arith.constant 0 : index
    %105 = vector.load %arg7[%c11_55, %c0_56] : memref<15x128xf32, #tpu.memory_space<vmem>>, vector<1x128xf32>
    %c12 = arith.constant 12 : index
    %c0_57 = arith.constant 0 : index
    %106 = vector.load %arg12[%c12, %c0_57] : memref<32x128xbf16, #tpu.memory_space<vmem>>, vector<16x128xbf16>
    %107 = arith.extf %106 : vector<16x128xbf16> to vector<16x128xf32>
    %108 = vector.broadcast %105 : vector<1x128xf32> to vector<16x128xf32>
    %109 = arith.mulf %107, %108 : vector<16x128xf32>
    %110 = arith.addf %86, %109 : vector<16x128xf32>
    %c12_58 = arith.constant 12 : index
    %c0_59 = arith.constant 0 : index
    %111 = vector.load %arg7[%c12_58, %c0_59] : memref<15x128xf32, #tpu.memory_space<vmem>>, vector<1x128xf32>
    %c13 = arith.constant 13 : index
    %c0_60 = arith.constant 0 : index
    %112 = vector.load %arg12[%c13, %c0_60] : memref<32x128xbf16, #tpu.memory_space<vmem>>, vector<16x128xbf16>
    %113 = arith.extf %112 : vector<16x128xbf16> to vector<16x128xf32>
    %114 = vector.broadcast %111 : vector<1x128xf32> to vector<16x128xf32>
    %115 = arith.mulf %113, %114 : vector<16x128xf32>
    %116 = arith.addf %92, %115 : vector<16x128xf32>
    %c13_61 = arith.constant 13 : index
    %c0_62 = arith.constant 0 : index
    %117 = vector.load %arg7[%c13_61, %c0_62] : memref<15x128xf32, #tpu.memory_space<vmem>>, vector<1x128xf32>
    %c14 = arith.constant 14 : index
    %c0_63 = arith.constant 0 : index
    %118 = vector.load %arg12[%c14, %c0_63] : memref<32x128xbf16, #tpu.memory_space<vmem>>, vector<16x128xbf16>
    %119 = arith.extf %118 : vector<16x128xbf16> to vector<16x128xf32>
    %120 = vector.broadcast %117 : vector<1x128xf32> to vector<16x128xf32>
    %121 = arith.mulf %119, %120 : vector<16x128xf32>
    %122 = arith.addf %98, %121 : vector<16x128xf32>
    %c14_64 = arith.constant 14 : index
    %c0_65 = arith.constant 0 : index
    %123 = vector.load %arg7[%c14_64, %c0_65] : memref<15x128xf32, #tpu.memory_space<vmem>>, vector<1x128xf32>
    %c15 = arith.constant 15 : index
    %c0_66 = arith.constant 0 : index
    %124 = vector.load %arg12[%c15, %c0_66] : memref<32x128xbf16, #tpu.memory_space<vmem>>, vector<16x128xbf16>
    %125 = arith.extf %124 : vector<16x128xbf16> to vector<16x128xf32>
    %126 = vector.broadcast %123 : vector<1x128xf32> to vector<16x128xf32>
    %127 = arith.mulf %125, %126 : vector<16x128xf32>
    %128 = arith.addf %104, %127 : vector<16x128xf32>
    %129 = arith.addf %116, %122 : vector<16x128xf32>
    %130 = arith.addf %129, %128 : vector<16x128xf32>
    %131 = arith.addf %130, %110 : vector<16x128xf32>
    %c0_67 = arith.constant 0 : index
    %c0_68 = arith.constant 0 : index
    %132 = vector.load %arg8[%c0_67, %c0_68] : memref<1x128xf32, #tpu.memory_space<vmem>>, vector<1x128xf32>
    %133 = vector.broadcast %132 : vector<1x128xf32> to vector<16x128xf32>
    %134 = arith.addf %131, %133 : vector<16x128xf32>
    %cst_69 = arith.constant 0.000000e+00 : f32
    %135 = vector.broadcast %cst_69 : f32 to vector<16x128xf32>
    %136 = arith.maximumf %134, %135 : vector<16x128xf32>
    %137 = arith.truncf %136 : vector<16x128xf32> to vector<16x128xbf16>
    %c0_70 = arith.constant 0 : index
    %c0_71 = arith.constant 0 : index
    %138 = vector.load %arg9[%c0_70, %c0_71] : memref<128x128xbf16, #tpu.memory_space<vmem>>, vector<128x128xbf16>
    %cst_72 = arith.constant dense<0.000000e+00> : vector<16x128xf32>
    %139 = tpu.matmul %137, %138, %cst_72 {dimension_numbers = #tpu.dot_dimension_numbers<[1], [0], [0], [1], [0, 0, 1, 1], [], []>} : vector<16x128xbf16>, vector<128x128xbf16>, vector<16x128xf32> -> vector<16x128xf32>
    %c0_73 = arith.constant 0 : index
    %c0_74 = arith.constant 0 : index
    %140 = vector.load %arg10[%c0_73, %c0_74] : memref<1x128xf32, #tpu.memory_space<vmem>>, vector<1x128xf32>
    %141 = vector.broadcast %140 : vector<1x128xf32> to vector<16x128xf32>
    %142 = arith.addf %139, %141 : vector<16x128xf32>
    %c0_75 = arith.constant 0 : index
    %c0_76 = arith.constant 0 : index
    %c0_77 = arith.constant 0 : index
    %143 = vector.load %arg11[%c0_75, %c0_76, %c0_77] : memref<1x16x128xf32, #tpu.memory_space<vmem>>, vector<1x16x128xf32>
    %144 = vector.shape_cast %143 : vector<1x16x128xf32> to vector<16x128xf32>
    %145 = vector.shape_cast %142 : vector<16x128xf32> to vector<1x16x128xf32>
    tpu.vector_store %arg11[%c0_75, %c0_76, %c0_77], %145 {strides = array<i32>} : memref<1x16x128xf32, #tpu.memory_space<vmem>>, vector<1x16x128xf32>,
    return
  }
  func.func @transform_0(%arg0: i32, %arg1: i32) -> (i32, i32, i32) {
    %c2_i32 = arith.constant 2 : i32
    %0 = arith.muli %arg1, %c2_i32 : i32
    %c1_i32 = arith.constant 1 : i32
    %1 = arith.subi %0, %c1_i32 : i32
    %c0_i32 = arith.constant 0 : i32
    %2 = arith.maxsi %1, %c0_i32 : i32
    %c0_i32_0 = arith.constant 0 : i32
    %c0_i32_1 = arith.constant 0 : i32
    return %arg0, %2, %c0_i32_0 : i32, i32, i32
  }
  func.func @transform_1(%arg0: i32, %arg1: i32) -> (i32, i32, i32) {
    %c0_i32 = arith.constant 0 : i32
    %c0_i32_0 = arith.constant 0 : i32
    return %arg0, %arg1, %c0_i32 : i32, i32, i32
  }
  func.func @transform_2(%arg0: i32, %arg1: i32) -> (i32, i32, i32) {
    %c1_i32 = arith.constant 1 : i32
    %0 = arith.addi %arg1, %c1_i32 : i32
    %c2_i32 = arith.constant 2 : i32
    %1 = arith.muli %0, %c2_i32 : i32
    %c1_i32_0 = arith.constant 1 : i32
    %2 = arith.minsi %1, %c1_i32_0 : i32
    %c0_i32 = arith.constant 0 : i32
    %c0_i32_1 = arith.constant 0 : i32
    return %arg0, %2, %c0_i32 : i32, i32, i32
  }
  func.func @transform_3(%arg0: i32, %arg1: i32) -> (i32, i32) {
    %c0_i32 = arith.constant 0 : i32
    %c0_i32_0 = arith.constant 0 : i32
    %c0_i32_1 = arith.constant 0 : i32
    return %c0_i32, %c0_i32_0 : i32, i32
  }
  func.func @transform_4(%arg0: i32, %arg1: i32) -> (i32, i32) {
    %c0_i32 = arith.constant 0 : i32
    %c0_i32_0 = arith.constant 0 : i32
    %c0_i32_1 = arith.constant 0 : i32
    return %c0_i32, %c0_i32_0 : i32, i32
  }
  func.func @transform_5(%arg0: i32, %arg1: i32) -> (i32, i32) {
    %c0_i32 = arith.constant 0 : i32
    %c0_i32_0 = arith.constant 0 : i32
    %c0_i32_1 = arith.constant 0 : i32
    return %c0_i32, %c0_i32_0 : i32, i32
  }
  func.func @transform_6(%arg0: i32, %arg1: i32) -> (i32, i32) {
    %c0_i32 = arith.constant 0 : i32
    %c0_i32_0 = arith.constant 0 : i32
    %c0_i32_1 = arith.constant 0 : i32
    return %c0_i32, %c0_i32_0 : i32, i32
  }
  func.func @transform_7(%arg0: i32, %arg1: i32) -> (i32, i32) {
    %c0_i32 = arith.constant 0 : i32
    %c0_i32_0 = arith.constant 0 : i32
    %c0_i32_1 = arith.constant 0 : i32
    return %c0_i32, %c0_i32_0 : i32, i32
  }
  func.func @transform_8(%arg0: i32, %arg1: i32) -> (i32, i32) {
    %c0_i32 = arith.constant 0 : i32
    %c0_i32_0 = arith.constant 0 : i32
    %c0_i32_1 = arith.constant 0 : i32
    return %c0_i32, %c0_i32_0 : i32, i32
  }
  func.func @transform_9(%arg0: i32, %arg1: i32) -> (i32, i32, i32) {
    %c0_i32 = arith.constant 0 : i32
    %c0_i32_0 = arith.constant 0 : i32
    return %arg0, %arg1, %c0_i32 : i32, i32, i32
  }
}

</mosaic_0001>

<llo_original>
// kernel: tpu_custom_call.1
$region0: #{tpu_custom_call.1}
  #allocation0 [shape = 'u32[]', space=smem, size = 0x4, offset = 0x4, fixed_abs, tag = 'smem constant byte address 0x4 - core index']
  #allocation1 [shape = 'u32[72,128]{1,0:T(1,128)}', space=vmem, size = 0x9000, scoped, tag = 'internal scratch']
  #allocation2 [shape = 'bf16[32,128]{1,0:T(8,128)(2,1)}', space=vmem, size = 0x2000, scoped, tag = 'scratch operand']
  %s0 = inlined_call_operand.hbm [shape: bf16[2,16,128], index: 0, kind: input, shape index: {}]
  %s1 = inlined_call_operand.hbm [shape: bf16[2,16,128], index: 1, kind: input, shape index: {}]
  %s2 = inlined_call_operand.hbm [shape: bf16[2,16,128], index: 2, kind: input, shape index: {}]
  %s3 = inlined_call_operand.hbm [shape: bf16[128,256], index: 3, kind: input, shape index: {}]
  %s4 = inlined_call_operand.vmem [shape: f32[1,256], index: 4, kind: input, shape index: {}]
  %s5 = inlined_call_operand.hbm [shape: f32[15,128], index: 5, kind: input, shape index: {}]
  %s6 = inlined_call_operand.vmem [shape: f32[1,128], index: 6, kind: input, shape index: {}]
  %s7 = inlined_call_operand.hbm [shape: bf16[128,128], index: 7, kind: input, shape index: {}]
  %s8 = inlined_call_operand.vmem [shape: f32[1,128], index: 8, kind: input, shape index: {}]
  %s9 = inlined_call_operand.hbm [shape: f32[2,16,128], index: 9, kind: output, shape index: {}]
  %s10 = sld [smem:[#allocation0]]
  $region93: #{tpu_custom_call.1} parent=0
    _
  %s12 = ssub.s32 1, %s10
  %s13 = scalar_select 0, %s12, %s10
  $region1: #{tpu_custom_call.1} parent=0
    #allocation3 [shape = 'u8[4096]{0}', space=vmem, size = 0x1000, scoped, tag = 'input window, operand 0']
    #allocation4 [shape = 's32[2]{0}', space=sflag, size = 0x8, scoped, tag = 'scoped memory for tpu_custom_call.1']
    #allocation5 [shape = 's32[2]{0}', space=sflag, size = 0x8, scoped, tag = 'scoped memory for tpu_custom_call.1']
    #allocation6 [shape = 'u8[8192]{0}', space=vmem, size = 0x2000, scoped, tag = 'input window, operand 1']
    #allocation7 [shape = 's32[2]{0}', space=sflag, size = 0x8, scoped, tag = 'scoped memory for tpu_custom_call.1']
    #allocation8 [shape = 'u8[4096]{0}', space=vmem, size = 0x1000, scoped, tag = 'input window, operand 2']
    #allocation9 [shape = 'u8[65536]{0}', space=vmem, size = 0x10000, scoped, tag = 'input window, operand 3, single buffered']
    #allocation10 [shape = 's32[1]{0}', space=sflag, size = 0x4, scoped, tag = 'scoped memory for tpu_custom_call.1']
    #allocation11 [shape = 'u8[8192]{0}', space=vmem, size = 0x2000, scoped, tag = 'input window, operand 5, single buffered']
    #allocation12 [shape = 'u8[32768]{0}', space=vmem, size = 0x8000, scoped, tag = 'input window, operand 7, single buffered']
    #allocation13 [shape = 's32[1]{0}', space=sflag, size = 0x4, scoped, tag = 'scoped memory for tpu_custom_call.1']
    #allocation14 [shape = 'u8[16384]{0}', space=vmem, size = 0x4000, scoped, tag = 'output window, operand 0']
    %14 = vsyncpa [#allocation4], 0
    %s15 = scalar_lea.sflag [#allocation4], 1
    %16 = vsyncpa %s15, 0
    %17 = vsyncpa [#allocation7], 0
    %s18 = scalar_lea.sflag [#allocation7], 1
    %19 = vsyncpa %s18, 0
    %20 = vsyncpa [#allocation10], 0
    %21 = vsyncpa [#allocation13], 0
    %22 = vsyncpa [#allocation5], 0
    %s23 = scalar_lea.sflag [#allocation5], 1
    %24 = vsyncpa %s23, 0
    loop: start=0, step=1, limit=4
    $region2: #{tpu_custom_call.1} parent=1 // loop_pre_header
      _
    $region3: #{tpu_custom_call.1} parent=1 // loop_header
      %s26 = sphi 0, %s30
      %p27 = scmp.ge.s32.totalorder %s26, 4
      %s33 = sphi 0, %s45
      %s34 = sphi 0, %s41
      %s35 = sphi 0, %s33
      %s36 = sphi 0, %s34
      %s37 = sphi 0, %s35
      %s38 = sphi 0, %s36
      %s58 = sphi 0, %s60
      %s61 = sphi 0, %s58
      %s62 = sphi 0, %s61
      %s78 = sphi 0, %s62
      %s86 = sphi 0, %s88
      %s89 = sphi 0, %s86
      %s90 = sphi 0, %s89
      %s106 = sphi 0, %s90
      %s122 = sphi 0, %s124
      %s125 = sphi 0, %s122
      %s126 = sphi 0, %s125
      %s142 = sphi 0, %s126
      %s146 = sphi 0, %s146
      %s148 = sphi 0, %s146
      %s149 = sphi 0, %s148
      %s163 = sphi 0, %s149
      %s167 = sphi 0, %s167
      %s169 = sphi 0, %s167
      %s170 = sphi 0, %s169
      %s184 = sphi 0, %s170
      %s188 = sphi 0, %s188
      %s190 = sphi 0, %s188
      %s191 = sphi 0, %s190
      %s205 = sphi 0, %s191
      %s209 = sphi 0, %s209
      %s211 = sphi 0, %s209
      %s212 = sphi 0, %s211
      %s226 = sphi 0, %s212
      %s230 = sphi 0, %s230
      %s232 = sphi 0, %s230
      %s233 = sphi 0, %s232
      %s247 = sphi 0, %s233
      %s251 = sphi 0, %s251
      %s253 = sphi 0, %s251
      %s254 = sphi 0, %s253
      %s268 = sphi 0, %s254
      %s276 = sphi 0, %s278
      %s279 = sphi 0, %s276
      %s280 = sphi 0, %s279
      %s296 = sphi 0, %s280
    $region4: #{tpu_custom_call.1} parent=1 // loop_header_branch
      %29 = sbr.rel (%p27) target = $region8
    $region5: #{tpu_custom_call.1} parent=1 // loop_body
      %s31 = ssub.s32 %s26, 1
      %s32 = ssub.s32 %s26, 2
      %s39 = sadd.s32 1, %s34
      %p40 = scmp.ge.s32.totalorder %s39, 1
      %s41 = scalar_select %p40, 0, %s39
      %s42 = sadd.s32 1, %s33
      %s43 = scalar_select %p40, %s42, %s33
      %p44 = scmp.ge.s32.totalorder %s43, 2
      %s45 = scalar_select %p44, 0, %s43
      %s46 = smul.u32 %s34, 2
      %s47 = ssub.s32 %s46, 1
      %p48 = scmp.gt.s32.totalorder %s47, 0
      %s49 = scalar_select %p48, %s47, 0
      %s50 = smul.u32 %s41, 2
      %s51 = ssub.s32 %s50, 1
      %p52 = scmp.gt.s32.totalorder %s51, 0
      %s53 = scalar_select %p52, %s51, 0
      %s54 = ssub.s32 %s33, %s45
      %s55 = ssub.s32 %s49, %s53
      %s56 = sor.u32 %s54, %s55
      %p57 = scmp.eq.s32.totalorder %s56, 0
      %s59 = sadd.s32 %s58, 1
      %s60 = scalar_select %p57, %s58, %s59
      %p63 = pneg %p57
      %p64 = scmp.eq.s32.totalorder %s26, 1
      %p65 = por %p63, %p64
      %p66 = scmp.ne.s32.totalorder %s58, %s61
      %p67 = scmp.eq.s32.totalorder %s26, 0
      %p68 = por %p66, %p67
      %p69 = scmp.ne.s32.totalorder %s58, %s61
      %p70 = scmp.eq.s32.totalorder %s31, 1
      %p71 = por %p69, %p70
      %p72 = scmp.ne.s32.totalorder %s61, %s62
      %p73 = scmp.eq.s32.totalorder %s31, 0
      %p74 = por %p72, %p73
      %p75 = scmp.ne.s32.totalorder %s61, %s62
      %p76 = scmp.eq.s32.totalorder %s32, 1
      %p77 = por %p75, %p76
      %p79 = scmp.ne.s32.totalorder %s62, %s78
      %p80 = scmp.eq.s32.totalorder %s32, 0
      %p81 = por %p79, %p80
      %s82 = ssub.s32 %s33, %s45
      %s83 = ssub.s32 %s34, %s41
      %s84 = sor.u32 %s82, %s83
      %p85 = scmp.eq.s32.totalorder %s84, 0
      %s87 = sadd.s32 %s86, 1
      %s88 = scalar_select %p85, %s86, %s87
      %p91 = pneg %p85
      %p92 = scmp.eq.s32.totalorder %s26, 1
      %p93 = por %p91, %p92
      %p94 = scmp.ne.s32.totalorder %s86, %s89
      %p95 = scmp.eq.s32.totalorder %s26, 0
      %p96 = por %p94, %p95
      %p97 = scmp.ne.s32.totalorder %s86, %s89
      %p98 = scmp.eq.s32.totalorder %s31, 1
      %p99 = por %p97, %p98
      %p100 = scmp.ne.s32.totalorder %s89, %s90
      %p101 = scmp.eq.s32.totalorder %s31, 0
      %p102 = por %p100, %p101
      %p103 = scmp.ne.s32.totalorder %s89, %s90
      %p104 = scmp.eq.s32.totalorder %s32, 1
      %p105 = por %p103, %p104
      %p107 = scmp.ne.s32.totalorder %s90, %s106
      %p108 = scmp.eq.s32.totalorder %s32, 0
      %p109 = por %p107, %p108
      %s110 = sadd.s32 %s34, 1
      %s111 = smul.u32 %s110, 2
      %p112 = scmp.lt.s32.totalorder %s111, 1
      %s113 = scalar_select %p112, %s111, 1
      %s114 = sadd.s32 %s41, 1
      %s115 = smul.u32 %s114, 2
      %p116 = scmp.lt.s32.totalorder %s115, 1
      %s117 = scalar_select %p116, %s115, 1
      %s118 = ssub.s32 %s33, %s45
      %s119 = ssub.s32 %s113, %s117
      %s120 = sor.u32 %s118, %s119
      %p121 = scmp.eq.s32.totalorder %s120, 0
      %s123 = sadd.s32 %s122, 1
      %s124 = scalar_select %p121, %s122, %s123
      %p127 = pneg %p121
      %p128 = scmp.eq.s32.totalorder %s26, 1
      %p129 = por %p127, %p128
      %p130 = scmp.ne.s32.totalorder %s122, %s125
      %p131 = scmp.eq.s32.totalorder %s26, 0
      %p132 = por %p130, %p131
      %p133 = scmp.ne.s32.totalorder %s122, %s125
      %p134 = scmp.eq.s32.totalorder %s31, 1
      %p135 = por %p133, %p134
      %p136 = scmp.ne.s32.totalorder %s125, %s126
      %p137 = scmp.eq.s32.totalorder %s31, 0
      %p138 = por %p136, %p137
      %p139 = scmp.ne.s32.totalorder %s125, %s126
      %p140 = scmp.eq.s32.totalorder %s32, 1
      %p141 = por %p139, %p140
      %p143 = scmp.ne.s32.totalorder %s126, %s142
      %p144 = scmp.eq.s32.totalorder %s32, 0
      %p145 = por %p143, %p144
      %s147 = sadd.s32 %s146, 1
      %p150 = scmp.eq.s32.totalorder %s26, 1
      %p151 = scmp.ne.s32.totalorder %s146, %s148
      %p152 = scmp.eq.s32.totalorder %s26, 0
      %p153 = por %p151, %p152
      %p154 = scmp.ne.s32.totalorder %s146, %s148
      %p155 = scmp.eq.s32.totalorder %s31, 1
      %p156 = por %p154, %p155
      %p157 = scmp.ne.s32.totalorder %s148, %s149
      %p158 = scmp.eq.s32.totalorder %s31, 0
      %p159 = por %p157, %p158
      %p160 = scmp.ne.s32.totalorder %s148, %s149
      %p161 = scmp.eq.s32.totalorder %s32, 1
      %p162 = por %p160, %p161
      %p164 = scmp.ne.s32.totalorder %s149, %s163
      %p165 = scmp.eq.s32.totalorder %s32, 0
      %p166 = por %p164, %p165
      %s168 = sadd.s32 %s167, 1
      %p171 = scmp.eq.s32.totalorder %s26, 1
      %p172 = scmp.ne.s32.totalorder %s167, %s169
      %p173 = scmp.eq.s32.totalorder %s26, 0
      %p174 = por %p172, %p173
      %p175 = scmp.ne.s32.totalorder %s167, %s169
      %p176 = scmp.eq.s32.totalorder %s31, 1
      %p177 = por %p175, %p176
      %p178 = scmp.ne.s32.totalorder %s169, %s170
      %p179 = scmp.eq.s32.totalorder %s31, 0
      %p180 = por %p178, %p179
      %p181 = scmp.ne.s32.totalorder %s169, %s170
      %p182 = scmp.eq.s32.totalorder %s32, 1
      %p183 = por %p181, %p182
      %p185 = scmp.ne.s32.totalorder %s170, %s184
      %p186 = scmp.eq.s32.totalorder %s32, 0
      %p187 = por %p185, %p186
      %s189 = sadd.s32 %s188, 1
      %p192 = scmp.eq.s32.totalorder %s26, 1
      %p193 = scmp.ne.s32.totalorder %s188, %s190
      %p194 = scmp.eq.s32.totalorder %s26, 0
      %p195 = por %p193, %p194
      %p196 = scmp.ne.s32.totalorder %s188, %s190
      %p197 = scmp.eq.s32.totalorder %s31, 1
      %p198 = por %p196, %p197
      %p199 = scmp.ne.s32.totalorder %s190, %s191
      %p200 = scmp.eq.s32.totalorder %s31, 0
      %p201 = por %p199, %p200
      %p202 = scmp.ne.s32.totalorder %s190, %s191
      %p203 = scmp.eq.s32.totalorder %s32, 1
      %p204 = por %p202, %p203
      %p206 = scmp.ne.s32.totalorder %s191, %s205
      %p207 = scmp.eq.s32.totalorder %s32, 0
      %p208 = por %p206, %p207
      %s210 = sadd.s32 %s209, 1
      %p213 = scmp.eq.s32.totalorder %s26, 1
      %p214 = scmp.ne.s32.totalorder %s209, %s211
      %p215 = scmp.eq.s32.totalorder %s26, 0
      %p216 = por %p214, %p215
      %p217 = scmp.ne.s32.totalorder %s209, %s211
      %p218 = scmp.eq.s32.totalorder %s31, 1
      %p219 = por %p217, %p218
      %p220 = scmp.ne.s32.totalorder %s211, %s212
      %p221 = scmp.eq.s32.totalorder %s31, 0
      %p222 = por %p220, %p221
      %p223 = scmp.ne.s32.totalorder %s211, %s212
      %p224 = scmp.eq.s32.totalorder %s32, 1
      %p225 = por %p223, %p224
      %p227 = scmp.ne.s32.totalorder %s212, %s226
      %p228 = scmp.eq.s32.totalorder %s32, 0
      %p229 = por %p227, %p228
      %s231 = sadd.s32 %s230, 1
      %p234 = scmp.eq.s32.totalorder %s26, 1
      %p235 = scmp.ne.s32.totalorder %s230, %s232
      %p236 = scmp.eq.s32.totalorder %s26, 0
      %p237 = por %p235, %p236
      %p238 = scmp.ne.s32.totalorder %s230, %s232
      %p239 = scmp.eq.s32.totalorder %s31, 1
      %p240 = por %p238, %p239
      %p241 = scmp.ne.s32.totalorder %s232, %s233
      %p242 = scmp.eq.s32.totalorder %s31, 0
      %p243 = por %p241, %p242
      %p244 = scmp.ne.s32.totalorder %s232, %s233
      %p245 = scmp.eq.s32.totalorder %s32, 1
      %p246 = por %p244, %p245
      %p248 = scmp.ne.s32.totalorder %s233, %s247
      %p249 = scmp.eq.s32.totalorder %s32, 0
      %p250 = por %p248, %p249
      %s252 = sadd.s32 %s251, 1
      %p255 = scmp.eq.s32.totalorder %s26, 1
      %p256 = scmp.ne.s32.totalorder %s251, %s253
      %p257 = scmp.eq.s32.totalorder %s26, 0
      %p258 = por %p256, %p257
      %p259 = scmp.ne.s32.totalorder %s251, %s253
      %p260 = scmp.eq.s32.totalorder %s31, 1
      %p261 = por %p259, %p260
      %p262 = scmp.ne.s32.totalorder %s253, %s254
      %p263 = scmp.eq.s32.totalorder %s31, 0
      %p264 = por %p262, %p263
      %p265 = scmp.ne.s32.totalorder %s253, %s254
      %p266 = scmp.eq.s32.totalorder %s32, 1
      %p267 = por %p265, %p266
      %p269 = scmp.ne.s32.totalorder %s254, %s268
      %p270 = scmp.eq.s32.totalorder %s32, 0
      %p271 = por %p269, %p270
      %s272 = ssub.s32 %s33, %s45
      %s273 = ssub.s32 %s34, %s41
      %s274 = sor.u32 %s272, %s273
      %p275 = scmp.eq.s32.totalorder %s274, 0
      %s277 = sadd.s32 %s276, 1
      %s278 = scalar_select %p275, %s276, %s277
      %p281 = pneg %p275
      %p282 = scmp.eq.s32.totalorder %s26, 1
      %p283 = por %p281, %p282
      %p284 = scmp.ne.s32.totalorder %s276, %s279
      %p285 = scmp.eq.s32.totalorder %s26, 0
      %p286 = por %p284, %p285
      %p287 = scmp.ne.s32.totalorder %s276, %s279
      %p288 = scmp.eq.s32.totalorder %s31, 1
      %p289 = por %p287, %p288
      %p290 = scmp.ne.s32.totalorder %s279, %s280
      %p291 = scmp.eq.s32.totalorder %s31, 0
      %p292 = por %p290, %p291
      %p293 = scmp.ne.s32.totalorder %s279, %s280
      %p294 = scmp.eq.s32.totalorder %s32, 1
      %p295 = por %p293, %p294
      %p297 = scmp.ne.s32.totalorder %s280, %s296
      %p298 = scmp.eq.s32.totalorder %s32, 0
      %p299 = por %p297, %p298
      %p300 = scmp.le.s32.totalorder 1, %s26
      %p301 = scmp.lt.s32.totalorder %s26, 3
      %p302 = pnand %p300, %p301
      %p303 = pneg %p302
      // Predicated region
      $region9: #{tpu_custom_call.1} parent=5 // pred_check
        _
      $region10: #{tpu_custom_call.1} parent=5 // pred_check_branch
        %305 = sbr.rel (%p302) target = $region12
      $region11: #{tpu_custom_call.1} parent=5 // pred_region
        %s306 = ssub.s32 %s26, 1
        // Predicated region
        $region13: #{tpu_custom_call.1} parent=11 // pred_check
          %p307 = pneg %p159
        $region14: #{tpu_custom_call.1} parent=11 // pred_check_branch
          %309 = sbr.rel (%p307) target = $region16
        $region15: #{tpu_custom_call.1} parent=11 // pred_region
          %311 = vsyncadd [#allocation10], 0
          %s312 = sshll.u32 %s3, 4
          %s313 = int_to_ptr.hbm [resolvable:$true] %s312
          %s314 = sshll.u32 [#allocation9], 4
          %s315 = int_to_ptr.vmem [resolvable:$true] %s314
          %320 = dma.hbm_to_vmem [thread:$0]  %s313, 2048, %s315, [#allocation10], 128, 128, 8
        $region16: #{tpu_custom_call.1} parent=11 // pred_fallthru
          _
        // Predicated region
        $region17: #{tpu_custom_call.1} parent=11 // pred_check
          %p321 = pneg %p180
        $region18: #{tpu_custom_call.1} parent=11 // pred_check_branch
          %323 = sbr.rel (%p321) target = $region20
        $region19: #{tpu_custom_call.1} parent=11 // pred_region
          _
        $region20: #{tpu_custom_call.1} parent=11 // pred_fallthru
          _
        // Predicated region
        $region21: #{tpu_custom_call.1} parent=11 // pred_check
          %p324 = pneg %p201
        $region22: #{tpu_custom_call.1} parent=11 // pred_check_branch
          %326 = sbr.rel (%p324) target = $region24
        $region23: #{tpu_custom_call.1} parent=11 // pred_region
          %328 = vsyncadd [#allocation10], 0
          %s329 = sshll.u32 %s5, 4
          %s330 = int_to_ptr.hbm [resolvable:$true] %s329
          %s331 = sshll.u32 [#allocation11], 4
          %s332 = int_to_ptr.vmem [resolvable:$true] %s331
          %337 = dma.hbm_to_vmem [thread:$0]  %s330, 256, %s332, [#allocation10], 128, 128, 8
        $region24: #{tpu_custom_call.1} parent=11 // pred_fallthru
          _
        // Predicated region
        $region25: #{tpu_custom_call.1} parent=11 // pred_check
          %p338 = pneg %p222
        $region26: #{tpu_custom_call.1} parent=11 // pred_check_branch
          %340 = sbr.rel (%p338) target = $region28
        $region27: #{tpu_custom_call.1} parent=11 // pred_region
          _
        $region28: #{tpu_custom_call.1} parent=11 // pred_fallthru
          _
        // Predicated region
        $region29: #{tpu_custom_call.1} parent=11 // pred_check
          %p341 = pneg %p243
        $region30: #{tpu_custom_call.1} parent=11 // pred_check_branch
          %343 = sbr.rel (%p341) target = $region32
        $region31: #{tpu_custom_call.1} parent=11 // pred_region
          %345 = vsyncadd [#allocation13], 0
          %s346 = sshll.u32 %s7, 4
          %s347 = int_to_ptr.hbm [resolvable:$true] %s346
          %s348 = sshll.u32 [#allocation12], 4
          %s349 = int_to_ptr.vmem [resolvable:$true] %s348
          %354 = dma.hbm_to_vmem [thread:$0]  %s347, 1024, %s349, [#allocation13], 64, 64, 4
        $region32: #{tpu_custom_call.1} parent=11 // pred_fallthru
          _
        // Predicated region
        $region33: #{tpu_custom_call.1} parent=11 // pred_check
          %p355 = pneg %p264
        $region34: #{tpu_custom_call.1} parent=11 // pred_check_branch
          %357 = sbr.rel (%p355) target = $region36
        $region35: #{tpu_custom_call.1} parent=11 // pred_region
          _
        $region36: #{tpu_custom_call.1} parent=11 // pred_fallthru
          _
      $region12: #{tpu_custom_call.1} parent=5 // pred_fallthru
        _
      %p358 = scmp.lt.s32.totalorder %s26, 2
      // Predicated region
      $region37: #{tpu_custom_call.1} parent=5 // pred_check
        %p359 = pneg %p358
      $region38: #{tpu_custom_call.1} parent=5 // pred_check_branch
        %361 = sbr.rel (%p359) target = $region40
      $region39: #{tpu_custom_call.1} parent=5 // pred_region
        // Predicated region
        $region41: #{tpu_custom_call.1} parent=39 // pred_check
          %p362 = pneg %p68
        $region42: #{tpu_custom_call.1} parent=39 // pred_check_branch
          %364 = sbr.rel (%p362) target = $region44
        $region43: #{tpu_custom_call.1} parent=39 // pred_region
          %s365 = sand.u32 %s58, 1
          %s366 = scalar_lea.sflag [#allocation4], %s365
          %s367 = sand.u32 %s58, 1
          %s368 = smul.addr %s367, 4
          %s369 = scalar_lea.vmem [#allocation3], %s368
          %s370 = smul.u32 %s34, 2
          %s371 = ssub.s32 %s370, 1
          %p372 = scmp.gt.s32.totalorder %s371, 0
          %s373 = scalar_select %p372, %s371, 0
          %375 = vsyncadd %s366, 0
          %s376 = smul.addr %s33, 2
          %s377 = sadd.s32 %s373, %s376
          %s378 = smul.addr %s377, 4
          %s379 = scalar_lea.hbm %s0, %s378
          %s381 = sshll.u32 %s379, 4
          %s382 = int_to_ptr.hbm [resolvable:$true] %s381
          %s383 = sshll.u32 %s369, 4
          %s384 = int_to_ptr.vmem [resolvable:$true] %s383
          %386 = dma.hbm_to_vmem [thread:$0]  %s382, 64, %s384, %s366
        $region44: #{tpu_custom_call.1} parent=39 // pred_fallthru
          _
        // Predicated region
        $region45: #{tpu_custom_call.1} parent=39 // pred_check
          %p387 = pneg %p96
        $region46: #{tpu_custom_call.1} parent=39 // pred_check_branch
          %389 = sbr.rel (%p387) target = $region48
        $region47: #{tpu_custom_call.1} parent=39 // pred_region
          %s390 = sand.u32 %s26, 1
          %s391 = scalar_lea.sflag [#allocation7], %s390
          %s392 = sand.u32 %s86, 1
          %s393 = smul.addr %s392, 8
          %s394 = scalar_lea.vmem [#allocation6], %s393
          %s395 = smul.u32 2, %s34
          %397 = vsyncadd %s391, 0
          %s398 = smul.addr %s33, 2
          %s399 = sadd.s32 %s395, %s398
          %s400 = smul.addr %s399, 4
          %s401 = scalar_lea.hbm %s1, %s400
          %s402 = sshll.u32 %s401, 4
          %s403 = int_to_ptr.hbm [resolvable:$true] %s402
          %s404 = sshll.u32 %s394, 4
          %s405 = int_to_ptr.vmem [resolvable:$true] %s404
          %410 = dma.hbm_to_vmem [thread:$0]  %s403, 128, %s405, %s391, 64, 64, 4
        $region48: #{tpu_custom_call.1} parent=39 // pred_fallthru
          _
        // Predicated region
        $region49: #{tpu_custom_call.1} parent=39 // pred_check
          %p411 = pneg %p132
        $region50: #{tpu_custom_call.1} parent=39 // pred_check_branch
          %413 = sbr.rel (%p411) target = $region52
        $region51: #{tpu_custom_call.1} parent=39 // pred_region
          %s414 = sand.u32 %s26, 1
          %s415 = scalar_lea.sflag [#allocation7], %s414
          %s416 = sand.u32 %s122, 1
          %s417 = smul.addr %s416, 4
          %s418 = scalar_lea.vmem [#allocation8], %s417
          %s419 = sadd.s32 %s34, 1
          %s420 = smul.u32 %s419, 2
          %p421 = scmp.lt.s32.totalorder %s420, 1
          %s422 = scalar_select %p421, %s420, 1
          %424 = vsyncadd %s415, 0
          %s425 = smul.addr %s33, 2
          %s426 = sadd.s32 %s422, %s425
          %s427 = smul.addr %s426, 4
          %s428 = scalar_lea.hbm %s2, %s427
          %s430 = sshll.u32 %s428, 4
          %s431 = int_to_ptr.hbm [resolvable:$true] %s430
          %s432 = sshll.u32 %s418, 4
          %s433 = int_to_ptr.vmem [resolvable:$true] %s432
          %435 = dma.hbm_to_vmem [thread:$0]  %s431, 64, %s433, %s415
        $region52: #{tpu_custom_call.1} parent=39 // pred_fallthru
          _
      $region40: #{tpu_custom_call.1} parent=5 // pred_fallthru
        _
      %p436 = scmp.le.s32.totalorder 1, %s26
      %p437 = scmp.lt.s32.totalorder %s26, 3
      %p438 = pnand %p436, %p437
      %p439 = pneg %p438
      // Predicated region
      $region53: #{tpu_custom_call.1} parent=5 // pred_check
        _
      $region54: #{tpu_custom_call.1} parent=5 // pred_check_branch
        %441 = sbr.rel (%p438) target = $region56
      $region55: #{tpu_custom_call.1} parent=5 // pred_region
        %s442 = ssub.s32 %s26, 1
        %s443 = sand.u32 %s61, 1
        %s444 = scalar_lea.sflag [#allocation4], %s443
        %s445 = sand.u32 %s61, 1
        %s446 = smul.addr %s445, 4
        %s447 = scalar_lea.vmem [#allocation3], %s446
        // Predicated region
        $region57: #{tpu_custom_call.1} parent=55 // pred_check
          %p448 = pneg %p74
        $region58: #{tpu_custom_call.1} parent=55 // pred_check_branch
          %450 = sbr.rel (%p448) target = $region60
        $region59: #{tpu_custom_call.1} parent=55 // pred_region
          %452 = dma.done %s444, 64
        $region60: #{tpu_custom_call.1} parent=55 // pred_fallthru
          _
        %s453 = sand.u32 %s31, 1
        %s454 = scalar_lea.sflag [#allocation7], %s453
        %s455 = sand.u32 %s89, 1
        %s456 = smul.addr %s455, 8
        %s457 = scalar_lea.vmem [#allocation6], %s456
        // Predicated region
        $region61: #{tpu_custom_call.1} parent=55 // pred_check
          %p458 = pneg %p102
        $region62: #{tpu_custom_call.1} parent=55 // pred_check_branch
          %460 = sbr.rel (%p458) target = $region64
        $region63: #{tpu_custom_call.1} parent=55 // pred_region
          %462 = dma.done %s454, 128
        $region64: #{tpu_custom_call.1} parent=55 // pred_fallthru
          _
        %s463 = sand.u32 %s31, 1
        %s464 = scalar_lea.sflag [#allocation7], %s463
        %s465 = sand.u32 %s125, 1
        %s466 = smul.addr %s465, 4
        %s467 = scalar_lea.vmem [#allocation8], %s466
        // Predicated region
        $region65: #{tpu_custom_call.1} parent=55 // pred_check
          %p468 = pneg %p138
        $region66: #{tpu_custom_call.1} parent=55 // pred_check_branch
          %470 = sbr.rel (%p468) target = $region68
        $region67: #{tpu_custom_call.1} parent=55 // pred_region
          %472 = dma.done %s464, 64
        $region68: #{tpu_custom_call.1} parent=55 // pred_fallthru
          _
        // Predicated region
        $region69: #{tpu_custom_call.1} parent=55 // pred_check
          %p473 = pneg %p159
        $region70: #{tpu_custom_call.1} parent=55 // pred_check_branch
          %475 = sbr.rel (%p473) target = $region72
        $region71: #{tpu_custom_call.1} parent=55 // pred_region
          %477 = dma.done [#allocation10], 2048
        $region72: #{tpu_custom_call.1} parent=55 // pred_fallthru
          _
        // Predicated region
        $region73: #{tpu_custom_call.1} parent=55 // pred_check
          %p478 = pneg %p201
        $region74: #{tpu_custom_call.1} parent=55 // pred_check_branch
          %480 = sbr.rel (%p478) target = $region76
        $region75: #{tpu_custom_call.1} parent=55 // pred_region
          %482 = dma.done [#allocation10], 256
        $region76: #{tpu_custom_call.1} parent=55 // pred_fallthru
          _
        // Predicated region
        $region77: #{tpu_custom_call.1} parent=55 // pred_check
          %p483 = pneg %p243
        $region78: #{tpu_custom_call.1} parent=55 // pred_check_branch
          %485 = sbr.rel (%p483) target = $region80
        $region79: #{tpu_custom_call.1} parent=55 // pred_region
          %487 = dma.done [#allocation13], 1024
        $region80: #{tpu_custom_call.1} parent=55 // pred_fallthru
          _
        %s488 = sand.u32 %s61, 1
        %s489 = scalar_lea.sflag [#allocation4], %s488
        %s490 = sand.u32 %s61, 1
        %s491 = smul.addr %s490, 4
        %s492 = scalar_lea.vmem [#allocation3], %s491
        %p493 = pneg %p74
        %p494 = pneg %p71
        %s495 = sand.u32 %s31, 1
        %s496 = scalar_lea.sflag [#allocation7], %s495
        %s497 = sand.u32 %s89, 1
        %s498 = smul.addr %s497, 8
        %s499 = scalar_lea.vmem [#allocation6], %s498
        %p500 = pneg %p102
        %p501 = pneg %p99
        %s502 = sand.u32 %s31, 1
        %s503 = scalar_lea.sflag [#allocation7], %s502
        %s504 = sand.u32 %s125, 1
        %s505 = smul.addr %s504, 4
        %s506 = scalar_lea.vmem [#allocation8], %s505
        %p507 = pneg %p138
        %p508 = pneg %p135
        %p509 = pneg %p159
        %p510 = pneg %p156
        %p511 = pneg %p180
        %p512 = pneg %p177
        %p513 = pneg %p201
        %p514 = pneg %p198
        %p515 = pneg %p222
        %p516 = pneg %p219
        %p517 = pneg %p243
        %p518 = pneg %p240
        %p519 = pneg %p264
        %p520 = pneg %p261
        %p521 = pneg %p292
        %p522 = pneg %p289
        %s523 = sand.u32 %s279, 1
        %s524 = scalar_lea.sflag [#allocation5], %s523
        %s525 = sand.u32 %s279, 1
        %s526 = smul.addr %s525, 16
        %s527 = scalar_lea.vmem [#allocation14], %s526
        %s528 = smul.u32 %s36, 2
        %s529 = ssub.s32 %s528, 1
        %p530 = scmp.gt.s32.totalorder %s529, 0
        %s531 = scalar_select %p530, %s529, 0
        %s532 = smul.u32 2, %s36
        %s533 = sadd.s32 %s36, 1
        %s534 = smul.u32 %s533, 2
        %p535 = scmp.lt.s32.totalorder %s534, 1
        %s536 = scalar_select %p535, %s534, 1
        %s537 = smul.u32 2, %s36
        %v538 = vld [vmem:[%s447] sm:$0xf]
        %v539 = vld [vmem:[%s457] sm:$0xf]
        %v540 = vld [vmem:[%s457 + $0x4] sm:$0xf]
        %v541 = vld [vmem:[%s467] sm:$0xf]
        %v544 = vunpack.c.l.b16 %v539
        %v545 = vunpack.c.l.b16 %v540
        %v546 = vpack.c.b16 %v544, %v544
        %v547 = vpack.c.b16 %v545, %v545
        %v549 = vunpack.c.l.b16 %v541
        %v550 = vpack.c.b16 %v549, %v549
        %vm551 = vcmask 1043456
        %v554 = vsel %vm551, %v538, %v546
        %v558 = vsel %vm551, %v547, %v550
        %v560 = vld [vmem:[#allocation9] sm:$0xff]
        %v561 = vld [vmem:[#allocation9 + $0x8] sm:$0xff]
        %v562 = vld [vmem:[#allocation9 + $0x10] sm:$0xff]
        %v563 = vld [vmem:[#allocation9 + $0x18] sm:$0xff]
        %v564 = vld [vmem:[#allocation9 + $0x20] sm:$0xff]
        %v565 = vld [vmem:[#allocation9 + $0x28] sm:$0xff]
        %v566 = vld [vmem:[#allocation9 + $0x30] sm:$0xff]
        %v567 = vld [vmem:[#allocation9 + $0x38] sm:$0xff]
        %v568 = vld [vmem:[#allocation9 + $0x40] sm:$0xff]
        %v569 = vld [vmem:[#allocation9 + $0x48] sm:$0xff]
        %v570 = vld [vmem:[#allocation9 + $0x50] sm:$0xff]
        %v571 = vld [vmem:[#allocation9 + $0x58] sm:$0xff]
        %v572 = vld [vmem:[#allocation9 + $0x60] sm:$0xff]
        %v573 = vld [vmem:[#allocation9 + $0x68] sm:$0xff]
        %v574 = vld [vmem:[#allocation9 + $0x70] sm:$0xff]
        %v575 = vld [vmem:[#allocation9 + $0x78] sm:$0xff]
        %v576 = vld [vmem:[%s4] sm:$0x3]
        %v578 = vperm.slane %v576, 0
        %v579 = vperm.slane %v576, 1
        %v598 = vunpack.c.l.b16 %v560
        %v599 = vunpack.c.h.b16 %v560
        %v600 = vunpack.c.l.b16 %v561
        %v601 = vunpack.c.h.b16 %v561
        %v602 = vunpack.c.l.b16 %v562
        %v603 = vunpack.c.h.b16 %v562
        %v604 = vunpack.c.l.b16 %v563
        %v605 = vunpack.c.h.b16 %v563
        %v606 = vunpack.c.l.b16 %v564
        %v607 = vunpack.c.h.b16 %v564
        %v608 = vunpack.c.l.b16 %v565
        %v609 = vunpack.c.h.b16 %v565
        %v610 = vunpack.c.l.b16 %v566
        %v611 = vunpack.c.h.b16 %v566
        %v612 = vunpack.c.l.b16 %v567
        %v613 = vunpack.c.h.b16 %v567
        %v614 = vunpack.c.l.b16 %v568
        %v615 = vunpack.c.h.b16 %v568
        %v616 = vunpack.c.l.b16 %v569
        %v617 = vunpack.c.h.b16 %v569
        %v618 = vunpack.c.l.b16 %v570
        %v619 = vunpack.c.h.b16 %v570
        %v620 = vunpack.c.l.b16 %v571
        %v621 = vunpack.c.h.b16 %v571
        %v622 = vunpack.c.l.b16 %v572
        %v623 = vunpack.c.h.b16 %v572
        %v624 = vunpack.c.l.b16 %v573
        %v625 = vunpack.c.h.b16 %v573
        %v626 = vunpack.c.l.b16 %v574
        %v627 = vunpack.c.h.b16 %v574
        %v628 = vunpack.c.l.b16 %v575
        %v629 = vunpack.c.h.b16 %v575
        %v630 = vpack.c.b16 %v600, %v598
        %v631 = vpack.c.b16 %v601, %v599
        %v632 = vpack.c.b16 %v604, %v602
        %v633 = vpack.c.b16 %v605, %v603
        %v634 = vpack.c.b16 %v608, %v606
        %v635 = vpack.c.b16 %v609, %v607
        %v636 = vpack.c.b16 %v612, %v610
        %v637 = vpack.c.b16 %v613, %v611
        %v638 = vpack.c.b16 %v616, %v614
        %v639 = vpack.c.b16 %v617, %v615
        %v640 = vpack.c.b16 %v620, %v618
        %v641 = vpack.c.b16 %v621, %v619
        %v642 = vpack.c.b16 %v624, %v622
        %v643 = vpack.c.b16 %v625, %v623
        %v644 = vpack.c.b16 %v628, %v626
        %v645 = vpack.c.b16 %v629, %v627
        %662 = vmatpush.bf16.msra.mxu0 %v644
        %663 = vmatpush.bf16.msra.mxu0 %v642
        %664 = vmatpush.bf16.msra.mxu0 %v640
        %665 = vmatpush.bf16.msra.mxu0 %v638
        %666 = vmatpush.bf16.msra.mxu0 %v636
        %667 = vmatpush.bf16.msra.mxu0 %v634
        %668 = vmatpush.bf16.msra.mxu0 %v632
        %669 = vmatpush.bf16.msra.mxu0 %v630
        %670 = vmatmul.bf16.gmra.mxu0 %v554
        %v671 = vpop.f32.mrf.mxu0
        %v672 = vadd.f32 %v578, %v671
        %v673 = vpop.f32.mrf.mxu0
        %v674 = vadd.f32 %v578, %v673
        %675 = vmatmul.bf16.gmra.mxu0 %v558
        %v676 = vpop.f32.mrf.mxu0
        %v677 = vadd.f32 %v578, %v676
        %v678 = vpop.f32.mrf.mxu0
        %v679 = vadd.f32 %v578, %v678
        %680 = vdwg.mxu0
        %681 = vmatpush.bf16.msra.mxu0 %v645
        %682 = vmatpush.bf16.msra.mxu0 %v643
        %683 = vmatpush.bf16.msra.mxu0 %v641
        %684 = vmatpush.bf16.msra.mxu0 %v639
        %685 = vmatpush.bf16.msra.mxu0 %v637
        %686 = vmatpush.bf16.msra.mxu0 %v635
        %687 = vmatpush.bf16.msra.mxu0 %v633
        %688 = vmatpush.bf16.msra.mxu0 %v631
        %689 = vmatmul.bf16.gmra.mxu0 %v554
        %v690 = vpop.f32.mrf.mxu0
        %v691 = vadd.f32 %v579, %v690
        %v692 = vpop.f32.mrf.mxu0
        %v693 = vadd.f32 %v579, %v692
        %694 = vmatmul.bf16.gmra.mxu0 %v558
        %v695 = vpop.f32.mrf.mxu0
        %v696 = vadd.f32 %v579, %v695
        %v697 = vpop.f32.mrf.mxu0
        %v698 = vadd.f32 %v579, %v697
        %699 = vdwg.mxu0
        %v700 = vsub.f32 0.0, %v691
        %v701 = vsub.f32 0.0, %v693
        %v702 = vsub.f32 0.0, %v696
        %v703 = vsub.f32 0.0, %v698
        %v704 = vmul.f32 %v700, 1.442695
        %v705 = vpow.pop %v704
        %v706 = vmul.f32 %v701, 1.442695
        %v707 = vpow.pop %v706
        %v708 = vmul.f32 %v702, 1.442695
        %v709 = vpow.pop %v708
        %v710 = vmul.f32 %v703, 1.442695
        %v711 = vpow.pop %v710
        %v712 = vadd.f32 %v705, 1.0
        %v713 = vadd.f32 %v707, 1.0
        %v714 = vadd.f32 %v709, 1.0
        %v715 = vadd.f32 %v711, 1.0
        %v716 = vrcp.pop %v712
        %v717 = vrcp.pop %v713
        %v718 = vrcp.pop %v714
        %v719 = vrcp.pop %v715
        %v720 = vmul.f32 %v672, %v716
        %v721 = vmul.f32 %v674, %v717
        %v722 = vmul.f32 %v677, %v718
        %v723 = vmul.f32 %v679, %v719
        %s724 = smul.u32 %s36, 16
        %s725 = ssub.s32 %s724, 8
        %v726 = vlaneseq
        %v727 = vshrl.u32 %v726, 7
        %v728 = vadd.s32 %v727, 8
        %v729 = vadd.s32 %v727, 16
        %v730 = vadd.s32 %v727, 24
        %v731 = vstv %s725
        %v732 = vadd.s32 %v731, %v727
        %v733 = vadd.s32 %v731, %v728
        %v734 = vadd.s32 %v731, %v729
        %v735 = vadd.s32 %v731, %v730
        %vm736 = vcmp.ge.s32.totalorder %v732, 0
        %vm737 = vcmp.ge.s32.totalorder %v733, 0
        %vm738 = vcmp.ge.s32.totalorder %v734, 0
        %vm739 = vcmp.ge.s32.totalorder %v735, 0
        %vm740 = vcmp.lt.s32.totalorder %v732, 16
        %vm741 = vcmp.lt.s32.totalorder %v733, 16
        %vm742 = vcmp.lt.s32.totalorder %v734, 16
        %vm743 = vcmp.lt.s32.totalorder %v735, 16
        %vm744 = vmand %vm736, %vm740
        %vm745 = vmand %vm737, %vm741
        %vm746 = vmand %vm738, %vm742
        %vm747 = vmand %vm739, %vm743
        %v748 = vsel %vm744, %v720, 0.0
        %v749 = vsel %vm745, %v721, 0.0
        %v750 = vsel %vm746, %v722, 0.0
        %v751 = vsel %vm747, %v723, 0.0
        %v752 = vpack.c.bf16 %v748, %v748
        %v753 = vpack.c.bf16 %v749, %v749
        %v754 = vpack.c.bf16 %v750, %v750
        %v755 = vpack.c.bf16 %v751, %v751
        %756 = vst [vmem:[#allocation2] sm:$0xf] %v752
        %757 = vst [vmem:[#allocation2 + $0x4] sm:$0xf] %v753
        %758 = vst [vmem:[#allocation2 + $0x8] sm:$0xf] %v754
        %759 = vst [vmem:[#allocation2 + $0xc] sm:$0xf] %v755
        %v760 = vld [vmem:[#allocation11] sm:$0x1]
        %v761 = vld [vmem:[#allocation2] sm:$0xf]
        %v762 = vld [vmem:[#allocation2 + $0x4] sm:$0xf]
        %v763 = vld [vmem:[#allocation2 + $0x8] sm:$0x1]
        %v764 = vunpack.c.l.bf16 %v761
        %v765 = vunpack.c.l.bf16 %v762
        %v766 = vunpack.c.l.bf16 %v763
        %v767 = vperm.slane %v760, 0
        %v768 = vmul.f32 %v764, %v767
        %v769 = vmul.f32 %v765, %v767
        %v770 = vmul.f32 %v766, %v767
        %v771 = vadd.f32 %v768, 0.0
        %v772 = vadd.f32 %v769, 0.0
        %v773 = vadd.f32 %v770, 0.0
        %v774 = vld [vmem:[#allocation11 + $0x1] sm:$0x1]
        %v775 = vld [vmem:[#allocation2] sm:$0xe]
        %v776 = vunpack.c.l.bf16 %v775
        %v777 = vperm.slane %v774, 0
        %v778 = vmul.f32 %v776, %v777
        %v779 = vmul.f32 %v765, %v777
        %v780 = vmul.f32 %v766, %v777
        %v781 = vadd.f32 %v778, 0.0
        %v782 = vadd.f32 %v779, 0.0
        %v783 = vadd.f32 %v780, 0.0
        %v784 = vld [vmem:[#allocation11 + $0x2] sm:$0x1]
        %v785 = vld [vmem:[#allocation2 + $0x8] sm:$0x3]
        %v786 = vunpack.c.l.bf16 %v785
        %v787 = vperm.slane %v784, 0
        %v788 = vmul.f32 %v776, %v787
        %v789 = vmul.f32 %v765, %v787
        %v790 = vmul.f32 %v786, %v787
        %v791 = vadd.f32 %v788, 0.0
        %v792 = vadd.f32 %v789, 0.0
        %v793 = vadd.f32 %v790, 0.0
        %v794 = vld [vmem:[#allocation11 + $0x3] sm:$0x1]
        %v795 = vld [vmem:[#allocation2] sm:$0xc]
        %v796 = vunpack.c.l.bf16 %v795
        %v797 = vperm.slane %v794, 0
        %v798 = vmul.f32 %v796, %v797
        %v799 = vmul.f32 %v765, %v797
        %v800 = vmul.f32 %v786, %v797
        %v801 = vadd.f32 %v798, 0.0
        %v802 = vadd.f32 %v799, 0.0
        %v803 = vadd.f32 %v800, 0.0
        %v804 = vld [vmem:[#allocation11 + $0x4] sm:$0x1]
        %v805 = vld [vmem:[#allocation2 + $0x8] sm:$0x7]
        %v806 = vunpack.c.l.bf16 %v805
        %v807 = vperm.slane %v804, 0
        %v808 = vmul.f32 %v796, %v807
        %v809 = vmul.f32 %v765, %v807
        %v810 = vmul.f32 %v806, %v807
        %v814 = vrot.slane %v808, 4
        %v815 = vrot.slane %v809, 4
        %v816 = vsel %vm551, %v814, %v815
        %v817 = vrot.slane %v810, 4
        %v818 = vsel %vm551, %v815, %v817
        %v822 = vadd.f32 %v771, %v816
        %v823 = vadd.f32 %v772, %v818
        %v824 = vadd.f32 %v773, %v817
        %v825 = vld [vmem:[#allocation11 + $0x5] sm:$0x1]
        %v826 = vld [vmem:[#allocation2] sm:$0x8]
        %v827 = vunpack.c.l.bf16 %v826
        %v828 = vperm.slane %v825, 0
        %v829 = vmul.f32 %v827, %v828
        %v830 = vmul.f32 %v765, %v828
        %v831 = vmul.f32 %v806, %v828
        %v835 = vrot.slane %v829, 4
        %v836 = vrot.slane %v830, 4
        %v837 = vsel %vm551, %v835, %v836
        %v838 = vrot.slane %v831, 4
        %v839 = vsel %vm551, %v836, %v838
        %v843 = vadd.f32 %v781, %v837
        %v844 = vadd.f32 %v782, %v839
        %v845 = vadd.f32 %v783, %v838
        %v846 = vld [vmem:[#allocation11 + $0x6] sm:$0x1]
        %v847 = vld [vmem:[#allocation2 + $0x8] sm:$0xf]
        %v848 = vunpack.c.l.bf16 %v847
        %v849 = vperm.slane %v846, 0
        %v850 = vmul.f32 %v827, %v849
        %v851 = vmul.f32 %v765, %v849
        %v852 = vmul.f32 %v848, %v849
        %v856 = vrot.slane %v850, 4
        %v857 = vrot.slane %v851, 4
        %v858 = vsel %vm551, %v856, %v857
        %v859 = vrot.slane %v852, 4
        %v860 = vsel %vm551, %v857, %v859
        %v864 = vadd.f32 %v791, %v858
        %v865 = vadd.f32 %v792, %v860
        %v866 = vadd.f32 %v793, %v859
        %v867 = vld [vmem:[#allocation11 + $0x7] sm:$0x1]
        %v868 = vperm.slane %v867, 0
        %v869 = vmul.f32 %v765, %v868
        %v870 = vmul.f32 %v848, %v868
        %v873 = vrot.slane %v869, 4
        %v874 = vrot.slane %v870, 4
        %v875 = vsel %vm551, %v873, %v874
        %v879 = vadd.f32 %v801, %v873
        %v880 = vadd.f32 %v802, %v875
        %v881 = vadd.f32 %v803, %v874
        %v882 = vld [vmem:[#allocation11 + $0x8] sm:$0x1]
        %v883 = vld [vmem:[#allocation2 + $0x4] sm:$0xf]
        %v884 = vld [vmem:[#allocation2 + $0x8] sm:$0xf]
        %v885 = vld [vmem:[#allocation2 + $0xc] sm:$0x1]
        %v886 = vunpack.c.l.bf16 %v883
        %v887 = vunpack.c.l.bf16 %v884
        %v888 = vunpack.c.l.bf16 %v885
        %v889 = vperm.slane %v882, 0
        %v890 = vmul.f32 %v886, %v889
        %v891 = vmul.f32 %v887, %v889
        %v892 = vmul.f32 %v888, %v889
        %v893 = vadd.f32 %v822, %v890
        %v894 = vadd.f32 %v823, %v891
        %v895 = vadd.f32 %v824, %v892
        %v896 = vld [vmem:[#allocation11 + $0x9] sm:$0x1]
        %v897 = vld [vmem:[#allocation2 + $0x4] sm:$0xe]
        %v898 = vunpack.c.l.bf16 %v897
        %v899 = vperm.slane %v896, 0
        %v900 = vmul.f32 %v898, %v899
        %v901 = vmul.f32 %v887, %v899
        %v902 = vmul.f32 %v888, %v899
        %v903 = vadd.f32 %v843, %v900
        %v904 = vadd.f32 %v844, %v901
        %v905 = vadd.f32 %v845, %v902
        %v906 = vld [vmem:[#allocation11 + $0xa] sm:$0x1]
        %v907 = vld [vmem:[#allocation2 + $0xc] sm:$0x3]
        %v908 = vunpack.c.l.bf16 %v907
        %v909 = vperm.slane %v906, 0
        %v910 = vmul.f32 %v898, %v909
        %v911 = vmul.f32 %v887, %v909
        %v912 = vmul.f32 %v908, %v909
        %v913 = vadd.f32 %v864, %v910
        %v914 = vadd.f32 %v865, %v911
        %v915 = vadd.f32 %v866, %v912
        %v916 = vld [vmem:[#allocation11 + $0xb] sm:$0x1]
        %v917 = vld [vmem:[#allocation2 + $0x4] sm:$0xc]
        %v918 = vunpack.c.l.bf16 %v917
        %v919 = vperm.slane %v916, 0
        %v920 = vmul.f32 %v918, %v919
        %v921 = vmul.f32 %v887, %v919
        %v922 = vmul.f32 %v908, %v919
        %v923 = vadd.f32 %v879, %v920
        %v924 = vadd.f32 %v880, %v921
        %v925 = vadd.f32 %v881, %v922
        %v926 = vld [vmem:[#allocation11 + $0xc] sm:$0x1]
        %v927 = vld [vmem:[#allocation2 + $0xc] sm:$0x7]
        %v928 = vunpack.c.l.bf16 %v927
        %v929 = vperm.slane %v926, 0
        %v930 = vmul.f32 %v918, %v929
        %v931 = vmul.f32 %v887, %v929
        %v932 = vmul.f32 %v928, %v929
        %v936 = vrot.slane %v930, 4
        %v937 = vrot.slane %v931, 4
        %v938 = vsel %vm551, %v936, %v937
        %v939 = vrot.slane %v932, 4
        %v940 = vsel %vm551, %v937, %v939
        %v944 = vadd.f32 %v893, %v938
        %v945 = vadd.f32 %v894, %v940
        %v946 = vadd.f32 %v895, %v939
        %v947 = vld [vmem:[#allocation11 + $0xd] sm:$0x1]
        %v948 = vld [vmem:[#allocation2 + $0x4] sm:$0x8]
        %v949 = vunpack.c.l.bf16 %v948
        %v950 = vperm.slane %v947, 0
        %v951 = vmul.f32 %v949, %v950
        %v952 = vmul.f32 %v887, %v950
        %v953 = vmul.f32 %v928, %v950
        %v957 = vrot.slane %v951, 4
        %v958 = vrot.slane %v952, 4
        %v959 = vsel %vm551, %v957, %v958
        %v960 = vrot.slane %v953, 4
        %v961 = vsel %vm551, %v958, %v960
        %v965 = vadd.f32 %v903, %v959
        %v966 = vadd.f32 %v904, %v961
        %v967 = vadd.f32 %v905, %v960
        %v968 = vld [vmem:[#allocation11 + $0xe] sm:$0x1]
        %v969 = vld [vmem:[#allocation2 + $0xc] sm:$0xf]
        %v970 = vunpack.c.l.bf16 %v969
        %v971 = vperm.slane %v968, 0
        %v972 = vmul.f32 %v949, %v971
        %v973 = vmul.f32 %v887, %v971
        %v974 = vmul.f32 %v970, %v971
        %v978 = vrot.slane %v972, 4
        %v979 = vrot.slane %v973, 4
        %v980 = vsel %vm551, %v978, %v979
        %v981 = vrot.slane %v974, 4
        %v982 = vsel %vm551, %v979, %v981
        %v986 = vadd.f32 %v913, %v980
        %v987 = vadd.f32 %v914, %v982
        %v988 = vadd.f32 %v915, %v981
        %vm992 = vcmask 1046528
        %v993 = vrot.slane %v965, 1
        %v994 = vrot.slane %v966, 1
        %v995 = vsel %vm992, %v993, %v994
        %v996 = vrot.slane %v967, 1
        %v997 = vsel %vm992, %v994, %v996
        %v1001 = vadd.f32 %v944, %v995
        %v1002 = vadd.f32 %v945, %v997
        %v1003 = vadd.f32 %v946, %v996
        %vm1007 = vcmask 1045504
        %v1008 = vrot.slane %v986, 2
        %v1009 = vrot.slane %v987, 2
        %v1010 = vsel %vm1007, %v1008, %v1009
        %v1011 = vrot.slane %v988, 2
        %v1012 = vsel %vm1007, %v1009, %v1011
        %v1016 = vadd.f32 %v1001, %v1010
        %v1017 = vadd.f32 %v1002, %v1012
        %v1018 = vadd.f32 %v1003, %v1011
        %vm1022 = vcmask 1044480
        %v1023 = vrot.slane %v923, 3
        %v1024 = vrot.slane %v924, 3
        %v1025 = vsel %vm1022, %v1023, %v1024
        %v1026 = vrot.slane %v925, 3
        %v1027 = vsel %vm1022, %v1024, %v1026
        %v1031 = vadd.f32 %v1016, %v1025
        %v1032 = vadd.f32 %v1017, %v1027
        %v1033 = vadd.f32 %v1018, %v1026
        %v1034 = vld [vmem:[%s6] sm:$0x1]
        %v1036 = vperm.slane %v1034, 0
        %v1038 = vadd.f32 %v1031, %v1036
        %v1039 = vadd.f32 %v1032, %v1036
        %v1040 = vadd.f32 %v1033, %v1036
        %v1041 = vmax.f32 %v1038, 0.0
        %v1042 = vmax.f32 %v1039, 0.0
        %v1043 = vmax.f32 %v1040, 0.0
        %v1044 = vpack.c.bf16 %v1042, %v1041
        %v1045 = vpack.c.bf16 %v1043, %v1043
        %v1046 = vld [vmem:[#allocation12] sm:$0xf]
        %v1047 = vld [vmem:[#allocation12 + $0x4] sm:$0xf]
        %v1048 = vld [vmem:[#allocation12 + $0x8] sm:$0xf]
        %v1049 = vld [vmem:[#allocation12 + $0xc] sm:$0xf]
        %v1050 = vld [vmem:[#allocation12 + $0x10] sm:$0xf]
        %v1051 = vld [vmem:[#allocation12 + $0x14] sm:$0xf]
        %v1052 = vld [vmem:[#allocation12 + $0x18] sm:$0xf]
        %v1053 = vld [vmem:[#allocation12 + $0x1c] sm:$0xf]
        %v1054 = vld [vmem:[#allocation12 + $0x20] sm:$0xf]
        %v1055 = vld [vmem:[#allocation12 + $0x24] sm:$0xf]
        %v1056 = vld [vmem:[#allocation12 + $0x28] sm:$0xf]
        %v1057 = vld [vmem:[#allocation12 + $0x2c] sm:$0xf]
        %v1058 = vld [vmem:[#allocation12 + $0x30] sm:$0xf]
        %v1059 = vld [vmem:[#allocation12 + $0x34] sm:$0xf]
        %v1060 = vld [vmem:[#allocation12 + $0x38] sm:$0xf]
        %v1061 = vld [vmem:[#allocation12 + $0x3c] sm:$0xf]
        %v1062 = vld [vmem:[%s8] sm:$0x1]
        %v1064 = vperm.slane %v1062, 0
        %vm1066 = vsmask.f32 7424
        %v1068 = vshrl.u32 %v1044, 16
        %v1070 = vshll.u32 %v1044, 16
        %v1072 = vrot.slane %v1070, 1
        %v1073 = vor.u32 %v1068, %v1072
        %v1075 = vshll.u32 %v1045, 16
        %v1077 = vrot.slane %v1075, 1
        %v1078 = vsel %vm1066, %v1073, %v1077
        %v1096 = vunpack.c.l.b16 %v1046
        %v1097 = vunpack.c.l.b16 %v1047
        %v1098 = vunpack.c.l.b16 %v1048
        %v1099 = vunpack.c.l.b16 %v1049
        %v1100 = vunpack.c.l.b16 %v1050
        %v1101 = vunpack.c.l.b16 %v1051
        %v1102 = vunpack.c.l.b16 %v1052
        %v1103 = vunpack.c.l.b16 %v1053
        %v1104 = vunpack.c.l.b16 %v1054
        %v1105 = vunpack.c.l.b16 %v1055
        %v1106 = vunpack.c.l.b16 %v1056
        %v1107 = vunpack.c.l.b16 %v1057
        %v1108 = vunpack.c.l.b16 %v1058
        %v1109 = vunpack.c.l.b16 %v1059
        %v1110 = vunpack.c.l.b16 %v1060
        %v1111 = vunpack.c.l.b16 %v1061
        %v1112 = vpack.c.b16 %v1097, %v1096
        %v1113 = vpack.c.b16 %v1099, %v1098
        %v1114 = vpack.c.b16 %v1101, %v1100
        %v1115 = vpack.c.b16 %v1103, %v1102
        %v1116 = vpack.c.b16 %v1105, %v1104
        %v1117 = vpack.c.b16 %v1107, %v1106
        %v1118 = vpack.c.b16 %v1109, %v1108
        %v1119 = vpack.c.b16 %v1111, %v1110
        %1128 = vmatpush.bf16.msra.mxu0 %v1119
        %1129 = vmatpush.bf16.msra.mxu0 %v1118
        %1130 = vmatpush.bf16.msra.mxu0 %v1117
        %1131 = vmatpush.bf16.msra.mxu0 %v1116
        %1132 = vmatpush.bf16.msra.mxu0 %v1115
        %1133 = vmatpush.bf16.msra.mxu0 %v1114
        %1134 = vmatpush.bf16.msra.mxu0 %v1113
        %1135 = vmatpush.bf16.msra.mxu0 %v1112
        %1136 = vmatmul.bf16.gmra.mxu0 %v1078
        %v1137 = vpop.f32.mrf.mxu0
        %v1138 = vadd.f32 %v1064, %v1137
        %v1139 = vpop.f32.mrf.mxu0
        %v1140 = vadd.f32 %v1064, %v1139
        %1141 = vdwg.mxu0
        %1142 = vst [vmem:[%s527] sm:$0xff] %v1138
        %1143 = vst [vmem:[%s527 + $0x8] sm:$0xff] %v1140
        %s1144 = sand.u32 %s279, 1
        %s1145 = scalar_lea.sflag [#allocation5], %s1144
        %s1146 = sand.u32 %s279, 1
        %s1147 = smul.addr %s1146, 16
        %s1148 = scalar_lea.vmem [#allocation14], %s1147
        // Predicated region
        $region81: #{tpu_custom_call.1} parent=55 // pred_check
          %p1149 = pneg %p289
        $region82: #{tpu_custom_call.1} parent=55 // pred_check_branch
          %1151 = sbr.rel (%p1149) target = $region84
        $region83: #{tpu_custom_call.1} parent=55 // pred_region
          %s1152 = smul.u32 2, %s36
          %1154 = vsyncadd %s1145, 0
          %s1155 = smul.addr %s35, 2
          %s1156 = sadd.s32 %s1152, %s1155
          %s1157 = smul.addr %s1156, 8
          %s1158 = scalar_lea.hbm %s9, %s1157
          %s1159 = sshll.u32 %s1148, 4
          %s1160 = int_to_ptr.vmem [resolvable:$true] %s1159
          %s1161 = sshll.u32 %s1158, 4
          %s1162 = int_to_ptr.hbm [resolvable:$true] %s1161
          %1167 = dma.vmem_to_hbm [thread:$0]  %s1160, 256, %s1162, %s1145, 128, 128, 8
        $region84: #{tpu_custom_call.1} parent=55 // pred_fallthru
          _
      $region56: #{tpu_custom_call.1} parent=5 // pred_fallthru
        _
      %p1168 = scmp.le.s32.totalorder 2, %s26
      // Predicated region
      $region85: #{tpu_custom_call.1} parent=5 // pred_check
        %p1169 = pneg %p1168
      $region86: #{tpu_custom_call.1} parent=5 // pred_check_branch
        %1171 = sbr.rel (%p1169) target = $region88
      $region87: #{tpu_custom_call.1} parent=5 // pred_region
        %s1172 = ssub.s32 %s26, 2
        // Predicated region
        $region89: #{tpu_custom_call.1} parent=87 // pred_check
          %p1173 = pneg %p295
        $region90: #{tpu_custom_call.1} parent=87 // pred_check_branch
          %1175 = sbr.rel (%p1173) target = $region92
        $region91: #{tpu_custom_call.1} parent=87 // pred_region
          %s1176 = sand.u32 %s280, 1
          %s1177 = scalar_lea.sflag [#allocation5], %s1176
          %s1178 = sand.u32 %s280, 1
          %s1179 = smul.addr %s1178, 16
          %s1180 = scalar_lea.vmem [#allocation14], %s1179
          %1182 = dma.done %s1177, 256
        $region92: #{tpu_custom_call.1} parent=87 // pred_fallthru
          _
      $region88: #{tpu_custom_call.1} parent=5 // pred_fallthru
        _
    $region6: #{tpu_custom_call.1} parent=1 // loop_footer
      %s30 = sadd.s32 1, %s26
    $region7: #{tpu_custom_call.1} parent=1 // loop_footer_branch
      %25 = sbr.rel target = $region3
    $region8: #{tpu_custom_call.1} parent=1 // loop_exit
      _
    %1183 = vsyncpa [#allocation4], 1
    %s1184 = scalar_lea.sflag [#allocation4], 1
    %1185 = vsyncpa %s1184, 1
    %1186 = vsyncpa [#allocation7], 1
    %s1187 = scalar_lea.sflag [#allocation7], 1
    %1188 = vsyncpa %s1187, 1
    %1189 = vsyncpa [#allocation10], 1
    %1190 = vsyncpa [#allocation13], 1
    %1191 = vsyncpa [#allocation5], 1
    %s1192 = scalar_lea.sflag [#allocation5], 1
    %1193 = vsyncpa %s1192, 1

// kernel: tpu_custom_call.1
$region0: #{tpu_custom_call.1}
  #allocation0 [shape = 'u32[]', space=smem, size = 0x4, offset = 0x4, fixed_abs, tag = 'smem constant byte address 0x4 - core index']
  #allocation1 [shape = 'u32[72,128]{1,0:T(1,128)}', space=vmem, size = 0x9000, scoped, tag = 'internal scratch']
  #allocation2 [shape = 'bf16[32,128]{1,0:T(8,128)(2,1)}', space=vmem, size = 0x2000, scoped, tag = 'scratch operand']
  %s0 = inlined_call_operand.hbm [shape: bf16[2,16,128], index: 0, kind: input, shape index: {}]
  %s1 = inlined_call_operand.hbm [shape: bf16[2,16,128], index: 1, kind: input, shape index: {}]
  %s2 = inlined_call_operand.hbm [shape: bf16[2,16,128], index: 2, kind: input, shape index: {}]
  %s3 = inlined_call_operand.hbm [shape: bf16[128,256], index: 3, kind: input, shape index: {}]
  %s4 = inlined_call_operand.vmem [shape: f32[1,256], index: 4, kind: input, shape index: {}]
  %s5 = inlined_call_operand.hbm [shape: f32[15,128], index: 5, kind: input, shape index: {}]
  %s6 = inlined_call_operand.vmem [shape: f32[1,128], index: 6, kind: input, shape index: {}]
  %s7 = inlined_call_operand.hbm [shape: bf16[128,128], index: 7, kind: input, shape index: {}]
  %s8 = inlined_call_operand.vmem [shape: f32[1,128], index: 8, kind: input, shape index: {}]
  %s9 = inlined_call_operand.hbm [shape: f32[2,16,128], index: 9, kind: output, shape index: {}]
  %s10 = sld [smem:[#allocation0]]
  $region93: #{tpu_custom_call.1} parent=0
    _
  %s12 = ssub.s32 1, %s10
  %s13 = scalar_select 0, %s12, %s10
  $region1: #{tpu_custom_call.1} parent=0
    #allocation3 [shape = 'u8[4096]{0}', space=vmem, size = 0x1000, scoped, tag = 'input window, operand 0']
    #allocation4 [shape = 's32[2]{0}', space=sflag, size = 0x8, scoped, tag = 'scoped memory for tpu_custom_call.1']
    #allocation5 [shape = 's32[2]{0}', space=sflag, size = 0x8, scoped, tag = 'scoped memory for tpu_custom_call.1']
    #allocation6 [shape = 'u8[8192]{0}', space=vmem, size = 0x2000, scoped, tag = 'input window, operand 1']
    #allocation7 [shape = 's32[2]{0}', space=sflag, size = 0x8, scoped, tag = 'scoped memory for tpu_custom_call.1']
    #allocation8 [shape = 'u8[4096]{0}', space=vmem, size = 0x1000, scoped, tag = 'input window, operand 2']
    #allocation9 [shape = 'u8[65536]{0}', space=vmem, size = 0x10000, scoped, tag = 'input window, operand 3, single buffered']
    #allocation10 [shape = 's32[1]{0}', space=sflag, size = 0x4, scoped, tag = 'scoped memory for tpu_custom_call.1']
    #allocation11 [shape = 'u8[8192]{0}', space=vmem, size = 0x2000, scoped, tag = 'input window, operand 5, single buffered']
    #allocation12 [shape = 'u8[32768]{0}', space=vmem, size = 0x8000, scoped, tag = 'input window, operand 7, single buffered']
    #allocation13 [shape = 's32[1]{0}', space=sflag, size = 0x4, scoped, tag = 'scoped memory for tpu_custom_call.1']
    #allocation14 [shape = 'u8[16384]{0}', space=vmem, size = 0x4000, scoped, tag = 'output window, operand 0']
    %14 = vsyncpa [#allocation4], 0
    %s15 = scalar_lea.sflag [#allocation4], 1
    %16 = vsyncpa %s15, 0
    %17 = vsyncpa [#allocation7], 0
    %s18 = scalar_lea.sflag [#allocation7], 1
    %19 = vsyncpa %s18, 0
    %20 = vsyncpa [#allocation10], 0
    %21 = vsyncpa [#allocation13], 0
    %22 = vsyncpa [#allocation5], 0
    %s23 = scalar_lea.sflag [#allocation5], 1
    %24 = vsyncpa %s23, 0
    loop: start=0, step=1, limit=4
    $region2: #{tpu_custom_call.1} parent=1 // loop_pre_header
      _
    $region3: #{tpu_custom_call.1} parent=1 // loop_header
      %s26 = sphi 0, %s30
      %p27 = scmp.ge.s32.totalorder %s26, 4
      %s33 = sphi 0, %s45
      %s34 = sphi 0, %s41
      %s35 = sphi 0, %s33
      %s36 = sphi 0, %s34
      %s37 = sphi 0, %s35
      %s38 = sphi 0, %s36
      %s58 = sphi 0, %s60
      %s61 = sphi 0, %s58
      %s62 = sphi 0, %s61
      %s78 = sphi 0, %s62
      %s86 = sphi 0, %s88
      %s89 = sphi 0, %s86
      %s90 = sphi 0, %s89
      %s106 = sphi 0, %s90
      %s122 = sphi 0, %s124
      %s125 = sphi 0, %s122
      %s126 = sphi 0, %s125
      %s142 = sphi 0, %s126
      %s146 = sphi 0, %s146
      %s148 = sphi 0, %s146
      %s149 = sphi 0, %s148
      %s163 = sphi 0, %s149
      %s167 = sphi 0, %s167
      %s169 = sphi 0, %s167
      %s170 = sphi 0, %s169
      %s184 = sphi 0, %s170
      %s188 = sphi 0, %s188
      %s190 = sphi 0, %s188
      %s191 = sphi 0, %s190
      %s205 = sphi 0, %s191
      %s209 = sphi 0, %s209
      %s211 = sphi 0, %s209
      %s212 = sphi 0, %s211
      %s226 = sphi 0, %s212
      %s230 = sphi 0, %s230
      %s232 = sphi 0, %s230
      %s233 = sphi 0, %s232
      %s247 = sphi 0, %s233
      %s251 = sphi 0, %s251
      %s253 = sphi 0, %s251
      %s254 = sphi 0, %s253
      %s268 = sphi 0, %s254
      %s276 = sphi 0, %s278
      %s279 = sphi 0, %s276
      %s280 = sphi 0, %s279
      %s296 = sphi 0, %s280
    $region4: #{tpu_custom_call.1} parent=1 // loop_header_branch
      %29 = sbr.rel (%p27) target = $region8
    $region5: #{tpu_custom_call.1} parent=1 // loop_body
      %s31 = ssub.s32 %s26, 1
      %s32 = ssub.s32 %s26, 2
      %s39 = sadd.s32 1, %s34
      %p40 = scmp.ge.s32.totalorder %s39, 1
      %s41 = scalar_select %p40, 0, %s39
      %s42 = sadd.s32 1, %s33
      %s43 = scalar_select %p40, %s42, %s33
      %p44 = scmp.ge.s32.totalorder %s43, 2
      %s45 = scalar_select %p44, 0, %s43
      %s46 = smul.u32 %s34, 2
      %s47 = ssub.s32 %s46, 1
      %p48 = scmp.gt.s32.totalorder %s47, 0
      %s49 = scalar_select %p48, %s47, 0
      %s50 = smul.u32 %s41, 2
      %s51 = ssub.s32 %s50, 1
      %p52 = scmp.gt.s32.totalorder %s51, 0
      %s53 = scalar_select %p52, %s51, 0
      %s54 = ssub.s32 %s33, %s45
      %s55 = ssub.s32 %s49, %s53
      %s56 = sor.u32 %s54, %s55
      %p57 = scmp.eq.s32.totalorder %s56, 0
      %s59 = sadd.s32 %s58, 1
      %s60 = scalar_select %p57, %s58, %s59
      %p63 = pneg %p57
      %p64 = scmp.eq.s32.totalorder %s26, 1
      %p65 = por %p63, %p64
      %p66 = scmp.ne.s32.totalorder %s58, %s61
      %p67 = scmp.eq.s32.totalorder %s26, 0
      %p68 = por %p66, %p67
      %p69 = scmp.ne.s32.totalorder %s58, %s61
      %p70 = scmp.eq.s32.totalorder %s31, 1
      %p71 = por %p69, %p70
      %p72 = scmp.ne.s32.totalorder %s61, %s62
      %p73 = scmp.eq.s32.totalorder %s31, 0
      %p74 = por %p72, %p73
      %p75 = scmp.ne.s32.totalorder %s61, %s62
      %p76 = scmp.eq.s32.totalorder %s32, 1
      %p77 = por %p75, %p76
      %p79 = scmp.ne.s32.totalorder %s62, %s78
      %p80 = scmp.eq.s32.totalorder %s32, 0
      %p81 = por %p79, %p80
      %s82 = ssub.s32 %s33, %s45
      %s83 = ssub.s32 %s34, %s41
      %s84 = sor.u32 %s82, %s83
      %p85 = scmp.eq.s32.totalorder %s84, 0
      %s87 = sadd.s32 %s86, 1
      %s88 = scalar_select %p85, %s86, %s87
      %p91 = pneg %p85
      %p92 = scmp.eq.s32.totalorder %s26, 1
      %p93 = por %p91, %p92
      %p94 = scmp.ne.s32.totalorder %s86, %s89
      %p95 = scmp.eq.s32.totalorder %s26, 0
      %p96 = por %p94, %p95
      %p97 = scmp.ne.s32.totalorder %s86, %s89
      %p98 = scmp.eq.s32.totalorder %s31, 1
      %p99 = por %p97, %p98
      %p100 = scmp.ne.s32.totalorder %s89, %s90
      %p101 = scmp.eq.s32.totalorder %s31, 0
      %p102 = por %p100, %p101
      %p103 = scmp.ne.s32.totalorder %s89, %s90
      %p104 = scmp.eq.s32.totalorder %s32, 1
      %p105 = por %p103, %p104
      %p107 = scmp.ne.s32.totalorder %s90, %s106
      %p108 = scmp.eq.s32.totalorder %s32, 0
      %p109 = por %p107, %p108
      %s110 = sadd.s32 %s34, 1
      %s111 = smul.u32 %s110, 2
      %p112 = scmp.lt.s32.totalorder %s111, 1
      %s113 = scalar_select %p112, %s111, 1
      %s114 = sadd.s32 %s41, 1
      %s115 = smul.u32 %s114, 2
      %p116 = scmp.lt.s32.totalorder %s115, 1
      %s117 = scalar_select %p116, %s115, 1
      %s118 = ssub.s32 %s33, %s45
      %s119 = ssub.s32 %s113, %s117
      %s120 = sor.u32 %s118, %s119
      %p121 = scmp.eq.s32.totalorder %s120, 0
      %s123 = sadd.s32 %s122, 1
      %s124 = scalar_select %p121, %s122, %s123
      %p127 = pneg %p121
      %p128 = scmp.eq.s32.totalorder %s26, 1
      %p129 = por %p127, %p128
      %p130 = scmp.ne.s32.totalorder %s122, %s125
      %p131 = scmp.eq.s32.totalorder %s26, 0
      %p132 = por %p130, %p131
      %p133 = scmp.ne.s32.totalorder %s122, %s125
      %p134 = scmp.eq.s32.totalorder %s31, 1
      %p135 = por %p133, %p134
      %p136 = scmp.ne.s32.totalorder %s125, %s126
      %p137 = scmp.eq.s32.totalorder %s31, 0
      %p138 = por %p136, %p137
      %p139 = scmp.ne.s32.totalorder %s125, %s126
      %p140 = scmp.eq.s32.totalorder %s32, 1
      %p141 = por %p139, %p140
      %p143 = scmp.ne.s32.totalorder %s126, %s142
      %p144 = scmp.eq.s32.totalorder %s32, 0
      %p145 = por %p143, %p144
      %s147 = sadd.s32 %s146, 1
      %p150 = scmp.eq.s32.totalorder %s26, 1
      %p151 = scmp.ne.s32.totalorder %s146, %s148
      %p152 = scmp.eq.s32.totalorder %s26, 0
      %p153 = por %p151, %p152
      %p154 = scmp.ne.s32.totalorder %s146, %s148
      %p155 = scmp.eq.s32.totalorder %s31, 1
      %p156 = por %p154, %p155
      %p157 = scmp.ne.s32.totalorder %s148, %s149
      %p158 = scmp.eq.s32.totalorder %s31, 0
      %p159 = por %p157, %p158
      %p160 = scmp.ne.s32.totalorder %s148, %s149
      %p161 = scmp.eq.s32.totalorder %s32, 1
      %p162 = por %p160, %p161
      %p164 = scmp.ne.s32.totalorder %s149, %s163
      %p165 = scmp.eq.s32.totalorder %s32, 0
      %p166 = por %p164, %p165
      %s168 = sadd.s32 %s167, 1
      %p171 = scmp.eq.s32.totalorder %s26, 1
      %p172 = scmp.ne.s32.totalorder %s167, %s169
      %p173 = scmp.eq.s32.totalorder %s26, 0
      %p174 = por %p172, %p173
      %p175 = scmp.ne.s32.totalorder %s167, %s169
      %p176 = scmp.eq.s32.totalorder %s31, 1
      %p177 = por %p175, %p176
      %p178 = scmp.ne.s32.totalorder %s169, %s170
      %p179 = scmp.eq.s32.totalorder %s31, 0
      %p180 = por %p178, %p179
      %p181 = scmp.ne.s32.totalorder %s169, %s170
      %p182 = scmp.eq.s32.totalorder %s32, 1
      %p183 = por %p181, %p182
      %p185 = scmp.ne.s32.totalorder %s170, %s184
      %p186 = scmp.eq.s32.totalorder %s32, 0
      %p187 = por %p185, %p186
      %s189 = sadd.s32 %s188, 1
      %p192 = scmp.eq.s32.totalorder %s26, 1
      %p193 = scmp.ne.s32.totalorder %s188, %s190
      %p194 = scmp.eq.s32.totalorder %s26, 0
      %p195 = por %p193, %p194
      %p196 = scmp.ne.s32.totalorder %s188, %s190
      %p197 = scmp.eq.s32.totalorder %s31, 1
      %p198 = por %p196, %p197
      %p199 = scmp.ne.s32.totalorder %s190, %s191
      %p200 = scmp.eq.s32.totalorder %s31, 0
      %p201 = por %p199, %p200
      %p202 = scmp.ne.s32.totalorder %s190, %s191
      %p203 = scmp.eq.s32.totalorder %s32, 1
      %p204 = por %p202, %p203
      %p206 = scmp.ne.s32.totalorder %s191, %s205
      %p207 = scmp.eq.s32.totalorder %s32, 0
      %p208 = por %p206, %p207
      %s210 = sadd.s32 %s209, 1
      %p213 = scmp.eq.s32.totalorder %s26, 1
      %p214 = scmp.ne.s32.totalorder %s209, %s211
      %p215 = scmp.eq.s32.totalorder %s26, 0
      %p216 = por %p214, %p215
      %p217 = scmp.ne.s32.totalorder %s209, %s211
      %p218 = scmp.eq.s32.totalorder %s31, 1
      %p219 = por %p217, %p218
      %p220 = scmp.ne.s32.totalorder %s211, %s212
      %p221 = scmp.eq.s32.totalorder %s31, 0
      %p222 = por %p220, %p221
      %p223 = scmp.ne.s32.totalorder %s211, %s212
      %p224 = scmp.eq.s32.totalorder %s32, 1
      %p225 = por %p223, %p224
      %p227 = scmp.ne.s32.totalorder %s212, %s226
      %p228 = scmp.eq.s32.totalorder %s32, 0
      %p229 = por %p227, %p228
      %s231 = sadd.s32 %s230, 1
      %p234 = scmp.eq.s32.totalorder %s26, 1
      %p235 = scmp.ne.s32.totalorder %s230, %s232
      %p236 = scmp.eq.s32.totalorder %s26, 0
      %p237 = por %p235, %p236
      %p238 = scmp.ne.s32.totalorder %s230, %s232
      %p239 = scmp.eq.s32.totalorder %s31, 1
      %p240 = por %p238, %p239
      %p241 = scmp.ne.s32.totalorder %s232, %s233
      %p242 = scmp.eq.s32.totalorder %s31, 0
      %p243 = por %p241, %p242
      %p244 = scmp.ne.s32.totalorder %s232, %s233
      %p245 = scmp.eq.s32.totalorder %s32, 1
      %p246 = por %p244, %p245
      %p248 = scmp.ne.s32.totalorder %s233, %s247
      %p249 = scmp.eq.s32.totalorder %s32, 0
      %p250 = por %p248, %p249
      %s252 = sadd.s32 %s251, 1
      %p255 = scmp.eq.s32.totalorder %s26, 1
      %p256 = scmp.ne.s32.totalorder %s251, %s253
      %p257 = scmp.eq.s32.totalorder %s26, 0
      %p258 = por %p256, %p257
      %p259 = scmp.ne.s32.totalorder %s251, %s253
      %p260 = scmp.eq.s32.totalorder %s31, 1
      %p261 = por %p259, %p260
      %p262 = scmp.ne.s32.totalorder %s253, %s254
      %p263 = scmp.eq.s32.totalorder %s31, 0
      %p264 = por %p262, %p263
      %p265 = scmp.ne.s32.totalorder %s253, %s254
      %p266 = scmp.eq.s32.totalorder %s32, 1
      %p267 = por %p265, %p266
      %p269 = scmp.ne.s32.totalorder %s254, %s268
      %p270 = scmp.eq.s32.totalorder %s32, 0
      %p271 = por %p269, %p270
      %s272 = ssub.s32 %s33, %s45
      %s273 = ssub.s32 %s34, %s41
      %s274 = sor.u32 %s272, %s273
      %p275 = scmp.eq.s32.totalorder %s274, 0
      %s277 = sadd.s32 %s276, 1
      %s278 = scalar_select %p275, %s276, %s277
      %p281 = pneg %p275
      %p282 = scmp.eq.s32.totalorder %s26, 1
      %p283 = por %p281, %p282
      %p284 = scmp.ne.s32.totalorder %s276, %s279
      %p285 = scmp.eq.s32.totalorder %s26, 0
      %p286 = por %p284, %p285
      %p287 = scmp.ne.s32.totalorder %s276, %s279
      %p288 = scmp.eq.s32.totalorder %s31, 1
      %p289 = por %p287, %p288
      %p290 = scmp.ne.s32.totalorder %s279, %s280
      %p291 = scmp.eq.s32.totalorder %s31, 0
      %p292 = por %p290, %p291
      %p293 = scmp.ne.s32.totalorder %s279, %s280
      %p294 = scmp.eq.s32.totalorder %s32, 1
      %p295 = por %p293, %p294
      %p297 = scmp.ne.s32.totalorder %s280, %s296
      %p298 = scmp.eq.s32.totalorder %s32, 0
      %p299 = por %p297, %p298
      %p300 = scmp.le.s32.totalorder 1, %s26
      %p301 = scmp.lt.s32.totalorder %s26, 3
      %p302 = pnand %p300, %p301
      %p303 = pneg %p302
      // Predicated region
      $region9: #{tpu_custom_call.1} parent=5 // pred_check
        _
      $region10: #{tpu_custom_call.1} parent=5 // pred_check_branch
        %305 = sbr.rel (%p302) target = $region12
      $region11: #{tpu_custom_call.1} parent=5 // pred_region
        %s306 = ssub.s32 %s26, 1
        // Predicated region
        $region13: #{tpu_custom_call.1} parent=11 // pred_check
          %p307 = pneg %p159
        $region14: #{tpu_custom_call.1} parent=11 // pred_check_branch
          %309 = sbr.rel (%p307) target = $region16
        $region15: #{tpu_custom_call.1} parent=11 // pred_region
          %311 = vsyncadd [#allocation10], 0
          %s312 = sshll.u32 %s3, 4
          %s313 = int_to_ptr.hbm [resolvable:$true] %s312
          %s314 = sshll.u32 [#allocation9], 4
          %s315 = int_to_ptr.vmem [resolvable:$true] %s314
          %320 = dma.hbm_to_vmem [thread:$0]  %s313, 2048, %s315, [#allocation10], 128, 128, 8
        $region16: #{tpu_custom_call.1} parent=11 // pred_fallthru
          _
        // Predicated region
        $region17: #{tpu_custom_call.1} parent=11 // pred_check
          %p321 = pneg %p180
        $region18: #{tpu_custom_call.1} parent=11 // pred_check_branch
          %323 = sbr.rel (%p321) target = $region20
        $region19: #{tpu_custom_call.1} parent=11 // pred_region
          _
        $region20: #{tpu_custom_call.1} parent=11 // pred_fallthru
          _
        // Predicated region
        $region21: #{tpu_custom_call.1} parent=11 // pred_check
          %p324 = pneg %p201
        $region22: #{tpu_custom_call.1} parent=11 // pred_check_branch
          %326 = sbr.rel (%p324) target = $region24
        $region23: #{tpu_custom_call.1} parent=11 // pred_region
          %328 = vsyncadd [#allocation10], 0
          %s329 = sshll.u32 %s5, 4
          %s330 = int_to_ptr.hbm [resolvable:$true] %s329
          %s331 = sshll.u32 [#allocation11], 4
          %s332 = int_to_ptr.vmem [resolvable:$true] %s331
          %337 = dma.hbm_to_vmem [thread:$0]  %s330, 256, %s332, [#allocation10], 128, 128, 8
        $region24: #{tpu_custom_call.1} parent=11 // pred_fallthru
          _
        // Predicated region
        $region25: #{tpu_custom_call.1} parent=11 // pred_check
          %p338 = pneg %p222
        $region26: #{tpu_custom_call.1} parent=11 // pred_check_branch
          %340 = sbr.rel (%p338) target = $region28
        $region27: #{tpu_custom_call.1} parent=11 // pred_region
          _
        $region28: #{tpu_custom_call.1} parent=11 // pred_fallthru
          _
        // Predicated region
        $region29: #{tpu_custom_call.1} parent=11 // pred_check
          %p341 = pneg %p243
        $region30: #{tpu_custom_call.1} parent=11 // pred_check_branch
          %343 = sbr.rel (%p341) target = $region32
        $region31: #{tpu_custom_call.1} parent=11 // pred_region
          %345 = vsyncadd [#allocation13], 0
          %s346 = sshll.u32 %s7, 4
          %s347 = int_to_ptr.hbm [resolvable:$true] %s346
          %s348 = sshll.u32 [#allocation12], 4
          %s349 = int_to_ptr.vmem [resolvable:$true] %s348
          %354 = dma.hbm_to_vmem [thread:$0]  %s347, 1024, %s349, [#allocation13], 64, 64, 4
        $region32: #{tpu_custom_call.1} parent=11 // pred_fallthru
          _
        // Predicated region
        $region33: #{tpu_custom_call.1} parent=11 // pred_check
          %p355 = pneg %p264
        $region34: #{tpu_custom_call.1} parent=11 // pred_check_branch
          %357 = sbr.rel (%p355) target = $region36
        $region35: #{tpu_custom_call.1} parent=11 // pred_region
          _
        $region36: #{tpu_custom_call.1} parent=11 // pred_fallthru
          _
      $region12: #{tpu_custom_call.1} parent=5 // pred_fallthru
        _
      %p358 = scmp.lt.s32.totalorder %s26, 2
      // Predicated region
      $region37: #{tpu_custom_call.1} parent=5 // pred_check
        %p359 = pneg %p358
      $region38: #{tpu_custom_call.1} parent=5 // pred_check_branch
        %361 = sbr.rel (%p359) target = $region40
      $region39: #{tpu_custom_call.1} parent=5 // pred_region
        // Predicated region
        $region41: #{tpu_custom_call.1} parent=39 // pred_check
          %p362 = pneg %p68
        $region42: #{tpu_custom_call.1} parent=39 // pred_check_branch
          %364 = sbr.rel (%p362) target = $region44
        $region43: #{tpu_custom_call.1} parent=39 // pred_region
          %s365 = sand.u32 %s58, 1
          %s366 = scalar_lea.sflag [#allocation4], %s365
          %s367 = sand.u32 %s58, 1
          %s368 = smul.addr %s367, 4
          %s369 = scalar_lea.vmem [#allocation3], %s368
          %s370 = smul.u32 %s34, 2
          %s371 = ssub.s32 %s370, 1
          %p372 = scmp.gt.s32.totalorder %s371, 0
          %s373 = scalar_select %p372, %s371, 0
          %375 = vsyncadd %s366, 0
          %s376 = smul.addr %s33, 2
          %s377 = sadd.s32 %s373, %s376
          %s378 = smul.addr %s377, 4
          %s379 = scalar_lea.hbm %s0, %s378
          %s381 = sshll.u32 %s379, 4
          %s382 = int_to_ptr.hbm [resolvable:$true] %s381
          %s383 = sshll.u32 %s369, 4
          %s384 = int_to_ptr.vmem [resolvable:$true] %s383
          %386 = dma.hbm_to_vmem [thread:$0]  %s382, 64, %s384, %s366
        $region44: #{tpu_custom_call.1} parent=39 // pred_fallthru
          _
        // Predicated region
        $region45: #{tpu_custom_call.1} parent=39 // pred_check
          %p387 = pneg %p96
        $region46: #{tpu_custom_call.1} parent=39 // pred_check_branch
          %389 = sbr.rel (%p387) target = $region48
        $region47: #{tpu_custom_call.1} parent=39 // pred_region
          %s390 = sand.u32 %s26, 1
          %s391 = scalar_lea.sflag [#allocation7], %s390
          %s392 = sand.u32 %s86, 1
          %s393 = smul.addr %s392, 8
          %s394 = scalar_lea.vmem [#allocation6], %s393
          %s395 = smul.u32 2, %s34
          %397 = vsyncadd %s391, 0
          %s398 = smul.addr %s33, 2
          %s399 = sadd.s32 %s395, %s398
          %s400 = smul.addr %s399, 4
          %s401 = scalar_lea.hbm %s1, %s400
          %s402 = sshll.u32 %s401, 4
          %s403 = int_to_ptr.hbm [resolvable:$true] %s402
          %s404 = sshll.u32 %s394, 4
          %s405 = int_to_ptr.vmem [resolvable:$true] %s404
          %410 = dma.hbm_to_vmem [thread:$0]  %s403, 128, %s405, %s391, 64, 64, 4
        $region48: #{tpu_custom_call.1} parent=39 // pred_fallthru
          _
        // Predicated region
        $region49: #{tpu_custom_call.1} parent=39 // pred_check
          %p411 = pneg %p132
        $region50: #{tpu_custom_call.1} parent=39 // pred_check_branch
          %413 = sbr.rel (%p411) target = $region52
        $region51: #{tpu_custom_call.1} parent=39 // pred_region
          %s414 = sand.u32 %s26, 1
          %s415 = scalar_lea.sflag [#allocation7], %s414
          %s416 = sand.u32 %s122, 1
          %s417 = smul.addr %s416, 4
          %s418 = scalar_lea.vmem [#allocation8], %s417
          %s419 = sadd.s32 %s34, 1
          %s420 = smul.u32 %s419, 2
          %p421 = scmp.lt.s32.totalorder %s420, 1
          %s422 = scalar_select %p421, %s420, 1
          %424 = vsyncadd %s415, 0
          %s425 = smul.addr %s33, 2
          %s426 = sadd.s32 %s422, %s425
          %s427 = smul.addr %s426, 4
          %s428 = scalar_lea.hbm %s2, %s427
          %s430 = sshll.u32 %s428, 4
          %s431 = int_to_ptr.hbm [resolvable:$true] %s430
          %s432 = sshll.u32 %s418, 4
          %s433 = int_to_ptr.vmem [resolvable:$true] %s432
          %435 = dma.hbm_to_vmem [thread:$0]  %s431, 64, %s433, %s415
        $region52: #{tpu_custom_call.1} parent=39 // pred_fallthru
          _
      $region40: #{tpu_custom_call.1} parent=5 // pred_fallthru
        _
      %p436 = scmp.le.s32.totalorder 1, %s26
      %p437 = scmp.lt.s32.totalorder %s26, 3
      %p438 = pnand %p436, %p437
      %p439 = pneg %p438
      // Predicated region
      $region53: #{tpu_custom_call.1} parent=5 // pred_check
        _
      $region54: #{tpu_custom_call.1} parent=5 // pred_check_branch
        %441 = sbr.rel (%p438) target = $region56
      $region55: #{tpu_custom_call.1} parent=5 // pred_region
        %s442 = ssub.s32 %s26, 1
        %s443 = sand.u32 %s61, 1
        %s444 = scalar_lea.sflag [#allocation4], %s443
        %s445 = sand.u32 %s61, 1
        %s446 = smul.addr %s445, 4
        %s447 = scalar_lea.vmem [#allocation3], %s446
        // Predicated region
        $region57: #{tpu_custom_call.1} parent=55 // pred_check
          %p448 = pneg %p74
        $region58: #{tpu_custom_call.1} parent=55 // pred_check_branch
          %450 = sbr.rel (%p448) target = $region60
        $region59: #{tpu_custom_call.1} parent=55 // pred_region
          %452 = dma.done %s444, 64
        $region60: #{tpu_custom_call.1} parent=55 // pred_fallthru
          _
        %s453 = sand.u32 %s31, 1
        %s454 = scalar_lea.sflag [#allocation7], %s453
        %s455 = sand.u32 %s89, 1
        %s456 = smul.addr %s455, 8
        %s457 = scalar_lea.vmem [#allocation6], %s456
        // Predicated region
        $region61: #{tpu_custom_call.1} parent=55 // pred_check
          %p458 = pneg %p102
        $region62: #{tpu_custom_call.1} parent=55 // pred_check_branch
          %460 = sbr.rel (%p458) target = $region64
        $region63: #{tpu_custom_call.1} parent=55 // pred_region
          %462 = dma.done %s454, 128
        $region64: #{tpu_custom_call.1} parent=55 // pred_fallthru
          _
        %s463 = sand.u32 %s31, 1
        %s464 = scalar_lea.sflag [#allocation7], %s463
        %s465 = sand.u32 %s125, 1
        %s466 = smul.addr %s465, 4
        %s467 = scalar_lea.vmem [#allocation8], %s466
        // Predicated region
        $region65: #{tpu_custom_call.1} parent=55 // pred_check
          %p468 = pneg %p138
        $region66: #{tpu_custom_call.1} parent=55 // pred_check_branch
          %470 = sbr.rel (%p468) target = $region68
        $region67: #{tpu_custom_call.1} parent=55 // pred_region
          %472 = dma.done %s464, 64
        $region68: #{tpu_custom_call.1} parent=55 // pred_fallthru
          _
        // Predicated region
        $region69: #{tpu_custom_call.1} parent=55 // pred_check
          %p473 = pneg %p159
        $region70: #{tpu_custom_call.1} parent=55 // pred_check_branch
          %475 = sbr.rel (%p473) target = $region72
        $region71: #{tpu_custom_call.1} parent=55 // pred_region
          %477 = dma.done [#allocation10], 2048
        $region72: #{tpu_custom_call.1} parent=55 // pred_fallthru
          _
        // Predicated region
        $region73: #{tpu_custom_call.1} parent=55 // pred_check
          %p478 = pneg %p201
        $region74: #{tpu_custom_call.1} parent=55 // pred_check_branch
          %480 = sbr.rel (%p478) target = $region76
        $region75: #{tpu_custom_call.1} parent=55 // pred_region
          %482 = dma.done [#allocation10], 256
        $region76: #{tpu_custom_call.1} parent=55 // pred_fallthru
          _
        // Predicated region
        $region77: #{tpu_custom_call.1} parent=55 // pred_check
          %p483 = pneg %p243
        $region78: #{tpu_custom_call.1} parent=55 // pred_check_branch
          %485 = sbr.rel (%p483) target = $region80
        $region79: #{tpu_custom_call.1} parent=55 // pred_region
          %487 = dma.done [#allocation13], 1024
        $region80: #{tpu_custom_call.1} parent=55 // pred_fallthru
          _
        %s488 = sand.u32 %s61, 1
        %s489 = scalar_lea.sflag [#allocation4], %s488
        %s490 = sand.u32 %s61, 1
        %s491 = smul.addr %s490, 4
        %s492 = scalar_lea.vmem [#allocation3], %s491
        %p493 = pneg %p74
        %p494 = pneg %p71
        %s495 = sand.u32 %s31, 1
        %s496 = scalar_lea.sflag [#allocation7], %s495
        %s497 = sand.u32 %s89, 1
        %s498 = smul.addr %s497, 8
        %s499 = scalar_lea.vmem [#allocation6], %s498
        %p500 = pneg %p102
        %p501 = pneg %p99
        %s502 = sand.u32 %s31, 1
        %s503 = scalar_lea.sflag [#allocation7], %s502
        %s504 = sand.u32 %s125, 1
        %s505 = smul.addr %s504, 4
        %s506 = scalar_lea.vmem [#allocation8], %s505
        %p507 = pneg %p138
        %p508 = pneg %p135
        %p509 = pneg %p159
        %p510 = pneg %p156
        %p511 = pneg %p180
        %p512 = pneg %p177
        %p513 = pneg %p201
        %p514 = pneg %p198
        %p515 = pneg %p222
        %p516 = pneg %p219
        %p517 = pneg %p243
        %p518 = pneg %p240
        %p519 = pneg %p264
        %p520 = pneg %p261
        %p521 = pneg %p292
        %p522 = pneg %p289
        %s523 = sand.u32 %s279, 1
        %s524 = scalar_lea.sflag [#allocation5], %s523
        %s525 = sand.u32 %s279, 1
        %s526 = smul.addr %s525, 16
        %s527 = scalar_lea.vmem [#allocation14], %s526
        %s528 = smul.u32 %s36, 2
        %s529 = ssub.s32 %s528, 1
        %p530 = scmp.gt.s32.totalorder %s529, 0
        %s531 = scalar_select %p530, %s529, 0
        %s532 = smul.u32 2, %s36
        %s533 = sadd.s32 %s36, 1
        %s534 = smul.u32 %s533, 2
        %p535 = scmp.lt.s32.totalorder %s534, 1
        %s536 = scalar_select %p535, %s534, 1
        %s537 = smul.u32 2, %s36
        %v538 = vld [vmem:[%s447] sm:$0xf]
        %v539 = vld [vmem:[%s457] sm:$0xf]
        %v540 = vld [vmem:[%s457 + $0x4] sm:$0xf]
        %v541 = vld [vmem:[%s467] sm:$0xf]
        %v544 = vunpack.c.l.b16 %v539
        %v545 = vunpack.c.l.b16 %v540
        %v546 = vpack.c.b16 %v544, %v544
        %v547 = vpack.c.b16 %v545, %v545
        %v549 = vunpack.c.l.b16 %v541
        %v550 = vpack.c.b16 %v549, %v549
        %vm551 = vcmask 1043456
        %v554 = vsel %vm551, %v538, %v546
        %v558 = vsel %vm551, %v547, %v550
        %v560 = vld [vmem:[#allocation9] sm:$0xff]
        %v561 = vld [vmem:[#allocation9 + $0x8] sm:$0xff]
        %v562 = vld [vmem:[#allocation9 + $0x10] sm:$0xff]
        %v563 = vld [vmem:[#allocation9 + $0x18] sm:$0xff]
        %v564 = vld [vmem:[#allocation9 + $0x20] sm:$0xff]
        %v565 = vld [vmem:[#allocation9 + $0x28] sm:$0xff]
        %v566 = vld [vmem:[#allocation9 + $0x30] sm:$0xff]
        %v567 = vld [vmem:[#allocation9 + $0x38] sm:$0xff]
        %v568 = vld [vmem:[#allocation9 + $0x40] sm:$0xff]
        %v569 = vld [vmem:[#allocation9 + $0x48] sm:$0xff]
        %v570 = vld [vmem:[#allocation9 + $0x50] sm:$0xff]
        %v571 = vld [vmem:[#allocation9 + $0x58] sm:$0xff]
        %v572 = vld [vmem:[#allocation9 + $0x60] sm:$0xff]
        %v573 = vld [vmem:[#allocation9 + $0x68] sm:$0xff]
        %v574 = vld [vmem:[#allocation9 + $0x70] sm:$0xff]
        %v575 = vld [vmem:[#allocation9 + $0x78] sm:$0xff]
        %v576 = vld [vmem:[%s4] sm:$0x3]
        %v578 = vperm.slane %v576, 0
        %v579 = vperm.slane %v576, 1
        %v598 = vunpack.c.l.b16 %v560
        %v599 = vunpack.c.h.b16 %v560
        %v600 = vunpack.c.l.b16 %v561
        %v601 = vunpack.c.h.b16 %v561
        %v602 = vunpack.c.l.b16 %v562
        %v603 = vunpack.c.h.b16 %v562
        %v604 = vunpack.c.l.b16 %v563
        %v605 = vunpack.c.h.b16 %v563
        %v606 = vunpack.c.l.b16 %v564
        %v607 = vunpack.c.h.b16 %v564
        %v608 = vunpack.c.l.b16 %v565
        %v609 = vunpack.c.h.b16 %v565
        %v610 = vunpack.c.l.b16 %v566
        %v611 = vunpack.c.h.b16 %v566
        %v612 = vunpack.c.l.b16 %v567
        %v613 = vunpack.c.h.b16 %v567
        %v614 = vunpack.c.l.b16 %v568
        %v615 = vunpack.c.h.b16 %v568
        %v616 = vunpack.c.l.b16 %v569
        %v617 = vunpack.c.h.b16 %v569
        %v618 = vunpack.c.l.b16 %v570
        %v619 = vunpack.c.h.b16 %v570
        %v620 = vunpack.c.l.b16 %v571
        %v621 = vunpack.c.h.b16 %v571
        %v622 = vunpack.c.l.b16 %v572
        %v623 = vunpack.c.h.b16 %v572
        %v624 = vunpack.c.l.b16 %v573
        %v625 = vunpack.c.h.b16 %v573
        %v626 = vunpack.c.l.b16 %v574
        %v627 = vunpack.c.h.b16 %v574
        %v628 = vunpack.c.l.b16 %v575
        %v629 = vunpack.c.h.b16 %v575
        %v630 = vpack.c.b16 %v600, %v598
        %v631 = vpack.c.b16 %v601, %v599
        %v632 = vpack.c.b16 %v604, %v602
        %v633 = vpack.c.b16 %v605, %v603
        %v634 = vpack.c.b16 %v608, %v606
        %v635 = vpack.c.b16 %v609, %v607
        %v636 = vpack.c.b16 %v612, %v610
        %v637 = vpack.c.b16 %v613, %v611
        %v638 = vpack.c.b16 %v616, %v614
        %v639 = vpack.c.b16 %v617, %v615
        %v640 = vpack.c.b16 %v620, %v618
        %v641 = vpack.c.b16 %v621, %v619
        %v642 = vpack.c.b16 %v624, %v622
        %v643 = vpack.c.b16 %v625, %v623
        %v644 = vpack.c.b16 %v628, %v626
        %v645 = vpack.c.b16 %v629, %v627
        %662 = vmatpush.bf16.msra.mxu0 %v644
        %663 = vmatpush.bf16.msra.mxu0 %v642
        %664 = vmatpush.bf16.msra.mxu0 %v640
        %665 = vmatpush.bf16.msra.mxu0 %v638
        %666 = vmatpush.bf16.msra.mxu0 %v636
        %667 = vmatpush.bf16.msra.mxu0 %v634
        %668 = vmatpush.bf16.msra.mxu0 %v632
        %669 = vmatpush.bf16.msra.mxu0 %v630
        %670 = vmatmul.bf16.gmra.mxu0 %v554
        %v671 = vpop.f32.mrf.mxu0
        %v672 = vadd.f32 %v578, %v671
        %v673 = vpop.f32.mrf.mxu0
        %v674 = vadd.f32 %v578, %v673
        %675 = vmatmul.bf16.gmra.mxu0 %v558
        %v676 = vpop.f32.mrf.mxu0
        %v677 = vadd.f32 %v578, %v676
        %v678 = vpop.f32.mrf.mxu0
        %v679 = vadd.f32 %v578, %v678
        %680 = vdwg.mxu0
        %681 = vmatpush.bf16.msra.mxu0 %v645
        %682 = vmatpush.bf16.msra.mxu0 %v643
        %683 = vmatpush.bf16.msra.mxu0 %v641
        %684 = vmatpush.bf16.msra.mxu0 %v639
        %685 = vmatpush.bf16.msra.mxu0 %v637
        %686 = vmatpush.bf16.msra.mxu0 %v635
        %687 = vmatpush.bf16.msra.mxu0 %v633
        %688 = vmatpush.bf16.msra.mxu0 %v631
        %689 = vmatmul.bf16.gmra.mxu0 %v554
        %v690 = vpop.f32.mrf.mxu0
        %v691 = vadd.f32 %v579, %v690
        %v692 = vpop.f32.mrf.mxu0
        %v693 = vadd.f32 %v579, %v692
        %694 = vmatmul.bf16.gmra.mxu0 %v558
        %v695 = vpop.f32.mrf.mxu0
        %v696 = vadd.f32 %v579, %v695
        %v697 = vpop.f32.mrf.mxu0
        %v698 = vadd.f32 %v579, %v697
        %699 = vdwg.mxu0
        %v700 = vsub.f32 0.0, %v691
        %v701 = vsub.f32 0.0, %v693
        %v702 = vsub.f32 0.0, %v696
        %v703 = vsub.f32 0.0, %v698
        %v704 = vmul.f32 %v700, 1.442695
        %v705 = vpow.pop %v704
        %v706 = vmul.f32 %v701, 1.442695
        %v707 = vpow.pop %v706
        %v708 = vmul.f32 %v702, 1.442695
        %v709 = vpow.pop %v708
        %v710 = vmul.f32 %v703, 1.442695
        %v711 = vpow.pop %v710
        %v712 = vadd.f32 %v705, 1.0
        %v713 = vadd.f32 %v707, 1.0
        %v714 = vadd.f32 %v709, 1.0
        %v715 = vadd.f32 %v711, 1.0
        %v716 = vrcp.pop %v712
        %v717 = vrcp.pop %v713
        %v718 = vrcp.pop %v714
        %v719 = vrcp.pop %v715
        %v720 = vmul.f32 %v672, %v716
        %v721 = vmul.f32 %v674, %v717
        %v722 = vmul.f32 %v677, %v718
        %v723 = vmul.f32 %v679, %v719
        %s724 = smul.u32 %s36, 16
        %s725 = ssub.s32 %s724, 8
        %v726 = vlaneseq
        %v727 = vshrl.u32 %v726, 7
        %v728 = vadd.s32 %v727, 8
        %v729 = vadd.s32 %v727, 16
        %v730 = vadd.s32 %v727, 24
        %v731 = vstv %s725
        %v732 = vadd.s32 %v731, %v727
        %v733 = vadd.s32 %v731, %v728
        %v734 = vadd.s32 %v731, %v729
        %v735 = vadd.s32 %v731, %v730
        %vm736 = vcmp.ge.s32.totalorder %v732, 0
        %vm737 = vcmp.ge.s32.totalorder %v733, 0
        %vm738 = vcmp.ge.s32.totalorder %v734, 0
        %vm739 = vcmp.ge.s32.totalorder %v735, 0
        %vm740 = vcmp.lt.s32.totalorder %v732, 16
        %vm741 = vcmp.lt.s32.totalorder %v733, 16
        %vm742 = vcmp.lt.s32.totalorder %v734, 16
        %vm743 = vcmp.lt.s32.totalorder %v735, 16
        %vm744 = vmand %vm736, %vm740
        %vm745 = vmand %vm737, %vm741
        %vm746 = vmand %vm738, %vm742
        %vm747 = vmand %vm739, %vm743
        %v748 = vsel %vm744, %v720, 0.0
        %v749 = vsel %vm745, %v721, 0.0
        %v750 = vsel %vm746, %v722, 0.0
        %v751 = vsel %vm747, %v723, 0.0
        %v752 = vpack.c.bf16 %v748, %v748
        %v753 = vpack.c.bf16 %v749, %v749
        %v754 = vpack.c.bf16 %v750, %v750
        %v755 = vpack.c.bf16 %v751, %v751
        %756 = vst [vmem:[#allocation2] sm:$0xf] %v752
        %757 = vst [vmem:[#allocation2 + $0x4] sm:$0xf] %v753
        %758 = vst [vmem:[#allocation2 + $0x8] sm:$0xf] %v754
        %759 = vst [vmem:[#allocation2 + $0xc] sm:$0xf] %v755
        %v760 = vld [vmem:[#allocation11] sm:$0x1]
        %v761 = vld [vmem:[#allocation2] sm:$0xf]
        %v762 = vld [vmem:[#allocation2 + $0x4] sm:$0xf]
        %v763 = vld [vmem:[#allocation2 + $0x8] sm:$0x1]
        %v764 = vunpack.c.l.bf16 %v761
        %v765 = vunpack.c.l.bf16 %v762
        %v766 = vunpack.c.l.bf16 %v763
        %v767 = vperm.slane %v760, 0
        %v768 = vmul.f32 %v764, %v767
        %v769 = vmul.f32 %v765, %v767
        %v770 = vmul.f32 %v766, %v767
        %v771 = vadd.f32 %v768, 0.0
        %v772 = vadd.f32 %v769, 0.0
        %v773 = vadd.f32 %v770, 0.0
        %v774 = vld [vmem:[#allocation11 + $0x1] sm:$0x1]
        %v775 = vld [vmem:[#allocation2] sm:$0xe]
        %v776 = vunpack.c.l.bf16 %v775
        %v777 = vperm.slane %v774, 0
        %v778 = vmul.f32 %v776, %v777
        %v779 = vmul.f32 %v765, %v777
        %v780 = vmul.f32 %v766, %v777
        %v781 = vadd.f32 %v778, 0.0
        %v782 = vadd.f32 %v779, 0.0
        %v783 = vadd.f32 %v780, 0.0
        %v784 = vld [vmem:[#allocation11 + $0x2] sm:$0x1]
        %v785 = vld [vmem:[#allocation2 + $0x8] sm:$0x3]
        %v786 = vunpack.c.l.bf16 %v785
        %v787 = vperm.slane %v784, 0
        %v788 = vmul.f32 %v776, %v787
        %v789 = vmul.f32 %v765, %v787
        %v790 = vmul.f32 %v786, %v787
        %v791 = vadd.f32 %v788, 0.0
        %v792 = vadd.f32 %v789, 0.0
        %v793 = vadd.f32 %v790, 0.0
        %v794 = vld [vmem:[#allocation11 + $0x3] sm:$0x1]
        %v795 = vld [vmem:[#allocation2] sm:$0xc]
        %v796 = vunpack.c.l.bf16 %v795
        %v797 = vperm.slane %v794, 0
        %v798 = vmul.f32 %v796, %v797
        %v799 = vmul.f32 %v765, %v797
        %v800 = vmul.f32 %v786, %v797
        %v801 = vadd.f32 %v798, 0.0
        %v802 = vadd.f32 %v799, 0.0
        %v803 = vadd.f32 %v800, 0.0
        %v804 = vld [vmem:[#allocation11 + $0x4] sm:$0x1]
        %v805 = vld [vmem:[#allocation2 + $0x8] sm:$0x7]
        %v806 = vunpack.c.l.bf16 %v805
        %v807 = vperm.slane %v804, 0
        %v808 = vmul.f32 %v796, %v807
        %v809 = vmul.f32 %v765, %v807
        %v810 = vmul.f32 %v806, %v807
        %v814 = vrot.slane %v808, 4
        %v815 = vrot.slane %v809, 4
        %v816 = vsel %vm551, %v814, %v815
        %v817 = vrot.slane %v810, 4
        %v818 = vsel %vm551, %v815, %v817
        %v822 = vadd.f32 %v771, %v816
        %v823 = vadd.f32 %v772, %v818
        %v824 = vadd.f32 %v773, %v817
        %v825 = vld [vmem:[#allocation11 + $0x5] sm:$0x1]
        %v826 = vld [vmem:[#allocation2] sm:$0x8]
        %v827 = vunpack.c.l.bf16 %v826
        %v828 = vperm.slane %v825, 0
        %v829 = vmul.f32 %v827, %v828
        %v830 = vmul.f32 %v765, %v828
        %v831 = vmul.f32 %v806, %v828
        %v835 = vrot.slane %v829, 4
        %v836 = vrot.slane %v830, 4
        %v837 = vsel %vm551, %v835, %v836
        %v838 = vrot.slane %v831, 4
        %v839 = vsel %vm551, %v836, %v838
        %v843 = vadd.f32 %v781, %v837
        %v844 = vadd.f32 %v782, %v839
        %v845 = vadd.f32 %v783, %v838
        %v846 = vld [vmem:[#allocation11 + $0x6] sm:$0x1]
        %v847 = vld [vmem:[#allocation2 + $0x8] sm:$0xf]
        %v848 = vunpack.c.l.bf16 %v847
        %v849 = vperm.slane %v846, 0
        %v850 = vmul.f32 %v827, %v849
        %v851 = vmul.f32 %v765, %v849
        %v852 = vmul.f32 %v848, %v849
        %v856 = vrot.slane %v850, 4
        %v857 = vrot.slane %v851, 4
        %v858 = vsel %vm551, %v856, %v857
        %v859 = vrot.slane %v852, 4
        %v860 = vsel %vm551, %v857, %v859
        %v864 = vadd.f32 %v791, %v858
        %v865 = vadd.f32 %v792, %v860
        %v866 = vadd.f32 %v793, %v859
        %v867 = vld [vmem:[#allocation11 + $0x7] sm:$0x1]
        %v868 = vperm.slane %v867, 0
        %v869 = vmul.f32 %v765, %v868
        %v870 = vmul.f32 %v848, %v868
        %v873 = vrot.slane %v869, 4
        %v874 = vrot.slane %v870, 4
        %v875 = vsel %vm551, %v873, %v874
        %v879 = vadd.f32 %v801, %v873
        %v880 = vadd.f32 %v802, %v875
        %v881 = vadd.f32 %v803, %v874
        %v882 = vld [vmem:[#allocation11 + $0x8] sm:$0x1]
        %v883 = vld [vmem:[#allocation2 + $0x4] sm:$0xf]
        %v884 = vld [vmem:[#allocation2 + $0x8] sm:$0xf]
        %v885 = vld [vmem:[#allocation2 + $0xc] sm:$0x1]
        %v886 = vunpack.c.l.bf16 %v883
        %v887 = vunpack.c.l.bf16 %v884
        %v888 = vunpack.c.l.bf16 %v885
        %v889 = vperm.slane %v882, 0
        %v890 = vmul.f32 %v886, %v889
        %v891 = vmul.f32 %v887, %v889
        %v892 = vmul.f32 %v888, %v889
        %v893 = vadd.f32 %v822, %v890
        %v894 = vadd.f32 %v823, %v891
        %v895 = vadd.f32 %v824, %v892
        %v896 = vld [vmem:[#allocation11 + $0x9] sm:$0x1]
        %v897 = vld [vmem:[#allocation2 + $0x4] sm:$0xe]
        %v898 = vunpack.c.l.bf16 %v897
        %v899 = vperm.slane %v896, 0
        %v900 = vmul.f32 %v898, %v899
        %v901 = vmul.f32 %v887, %v899
        %v902 = vmul.f32 %v888, %v899
        %v903 = vadd.f32 %v843, %v900
        %v904 = vadd.f32 %v844, %v901
        %v905 = vadd.f32 %v845, %v902
        %v906 = vld [vmem:[#allocation11 + $0xa] sm:$0x1]
        %v907 = vld [vmem:[#allocation2 + $0xc] sm:$0x3]
        %v908 = vunpack.c.l.bf16 %v907
        %v909 = vperm.slane %v906, 0
        %v910 = vmul.f32 %v898, %v909
        %v911 = vmul.f32 %v887, %v909
        %v912 = vmul.f32 %v908, %v909
        %v913 = vadd.f32 %v864, %v910
        %v914 = vadd.f32 %v865, %v911
        %v915 = vadd.f32 %v866, %v912
        %v916 = vld [vmem:[#allocation11 + $0xb] sm:$0x1]
        %v917 = vld [vmem:[#allocation2 + $0x4] sm:$0xc]
        %v918 = vunpack.c.l.bf16 %v917
        %v919 = vperm.slane %v916, 0
        %v920 = vmul.f32 %v918, %v919
        %v921 = vmul.f32 %v887, %v919
        %v922 = vmul.f32 %v908, %v919
        %v923 = vadd.f32 %v879, %v920
        %v924 = vadd.f32 %v880, %v921
        %v925 = vadd.f32 %v881, %v922
        %v926 = vld [vmem:[#allocation11 + $0xc] sm:$0x1]
        %v927 = vld [vmem:[#allocation2 + $0xc] sm:$0x7]
        %v928 = vunpack.c.l.bf16 %v927
        %v929 = vperm.slane %v926, 0
        %v930 = vmul.f32 %v918, %v929
        %v931 = vmul.f32 %v887, %v929
        %v932 = vmul.f32 %v928, %v929
        %v936 = vrot.slane %v930, 4
        %v937 = vrot.slane %v931, 4
        %v938 = vsel %vm551, %v936, %v937
        %v939 = vrot.slane %v932, 4
        %v940 = vsel %vm551, %v937, %v939
        %v944 = vadd.f32 %v893, %v938
        %v945 = vadd.f32 %v894, %v940
        %v946 = vadd.f32 %v895, %v939
        %v947 = vld [vmem:[#allocation11 + $0xd] sm:$0x1]
        %v948 = vld [vmem:[#allocation2 + $0x4] sm:$0x8]
        %v949 = vunpack.c.l.bf16 %v948
        %v950 = vperm.slane %v947, 0
        %v951 = vmul.f32 %v949, %v950
        %v952 = vmul.f32 %v887, %v950
        %v953 = vmul.f32 %v928, %v950
        %v957 = vrot.slane %v951, 4
        %v958 = vrot.slane %v952, 4
        %v959 = vsel %vm551, %v957, %v958
        %v960 = vrot.slane %v953, 4
        %v961 = vsel %vm551, %v958, %v960
        %v965 = vadd.f32 %v903, %v959
        %v966 = vadd.f32 %v904, %v961
        %v967 = vadd.f32 %v905, %v960
        %v968 = vld [vmem:[#allocation11 + $0xe] sm:$0x1]
        %v969 = vld [vmem:[#allocation2 + $0xc] sm:$0xf]
        %v970 = vunpack.c.l.bf16 %v969
        %v971 = vperm.slane %v968, 0
        %v972 = vmul.f32 %v949, %v971
        %v973 = vmul.f32 %v887, %v971
        %v974 = vmul.f32 %v970, %v971
        %v978 = vrot.slane %v972, 4
        %v979 = vrot.slane %v973, 4
        %v980 = vsel %vm551, %v978, %v979
        %v981 = vrot.slane %v974, 4
        %v982 = vsel %vm551, %v979, %v981
        %v986 = vadd.f32 %v913, %v980
        %v987 = vadd.f32 %v914, %v982
        %v988 = vadd.f32 %v915, %v981
        %vm992 = vcmask 1046528
        %v993 = vrot.slane %v965, 1
        %v994 = vrot.slane %v966, 1
        %v995 = vsel %vm992, %v993, %v994
        %v996 = vrot.slane %v967, 1
        %v997 = vsel %vm992, %v994, %v996
        %v1001 = vadd.f32 %v944, %v995
        %v1002 = vadd.f32 %v945, %v997
        %v1003 = vadd.f32 %v946, %v996
        %vm1007 = vcmask 1045504
        %v1008 = vrot.slane %v986, 2
        %v1009 = vrot.slane %v987, 2
        %v1010 = vsel %vm1007, %v1008, %v1009
        %v1011 = vrot.slane %v988, 2
        %v1012 = vsel %vm1007, %v1009, %v1011
        %v1016 = vadd.f32 %v1001, %v1010
        %v1017 = vadd.f32 %v1002, %v1012
        %v1018 = vadd.f32 %v1003, %v1011
        %vm1022 = vcmask 1044480
        %v1023 = vrot.slane %v923, 3
        %v1024 = vrot.slane %v924, 3
        %v1025 = vsel %vm1022, %v1023, %v1024
        %v1026 = vrot.slane %v925, 3
        %v1027 = vsel %vm1022, %v1024, %v1026
        %v1031 = vadd.f32 %v1016, %v1025
        %v1032 = vadd.f32 %v1017, %v1027
        %v1033 = vadd.f32 %v1018, %v1026
        %v1034 = vld [vmem:[%s6] sm:$0x1]
        %v1036 = vperm.slane %v1034, 0
        %v1038 = vadd.f32 %v1031, %v1036
        %v1039 = vadd.f32 %v1032, %v1036
        %v1040 = vadd.f32 %v1033, %v1036
        %v1041 = vmax.f32 %v1038, 0.0
        %v1042 = vmax.f32 %v1039, 0.0
        %v1043 = vmax.f32 %v1040, 0.0
        %v1044 = vpack.c.bf16 %v1042, %v1041
        %v1045 = vpack.c.bf16 %v1043, %v1043
        %v1046 = vld [vmem:[#allocation12] sm:$0xf]
        %v1047 = vld [vmem:[#allocation12 + $0x4] sm:$0xf]
        %v1048 = vld [vmem:[#allocation12 + $0x8] sm:$0xf]
        %v1049 = vld [vmem:[#allocation12 + $0xc] sm:$0xf]
        %v1050 = vld [vmem:[#allocation12 + $0x10] sm:$0xf]
        %v1051 = vld [vmem:[#allocation12 + $0x14] sm:$0xf]
        %v1052 = vld [vmem:[#allocation12 + $0x18] sm:$0xf]
        %v1053 = vld [vmem:[#allocation12 + $0x1c] sm:$0xf]
        %v1054 = vld [vmem:[#allocation12 + $0x20] sm:$0xf]
        %v1055 = vld [vmem:[#allocation12 + $0x24] sm:$0xf]
        %v1056 = vld [vmem:[#allocation12 + $0x28] sm:$0xf]
        %v1057 = vld [vmem:[#allocation12 + $0x2c] sm:$0xf]
        %v1058 = vld [vmem:[#allocation12 + $0x30] sm:$0xf]
        %v1059 = vld [vmem:[#allocation12 + $0x34] sm:$0xf]
        %v1060 = vld [vmem:[#allocation12 + $0x38] sm:$0xf]
        %v1061 = vld [vmem:[#allocation12 + $0x3c] sm:$0xf]
        %v1062 = vld [vmem:[%s8] sm:$0x1]
        %v1064 = vperm.slane %v1062, 0
        %vm1066 = vsmask.f32 7424
        %v1068 = vshrl.u32 %v1044, 16
        %v1070 = vshll.u32 %v1044, 16
        %v1072 = vrot.slane %v1070, 1
        %v1073 = vor.u32 %v1068, %v1072
        %v1075 = vshll.u32 %v1045, 16
        %v1077 = vrot.slane %v1075, 1
        %v1078 = vsel %vm1066, %v1073, %v1077
        %v1096 = vunpack.c.l.b16 %v1046
        %v1097 = vunpack.c.l.b16 %v1047
        %v1098 = vunpack.c.l.b16 %v1048
        %v1099 = vunpack.c.l.b16 %v1049
        %v1100 = vunpack.c.l.b16 %v1050
        %v1101 = vunpack.c.l.b16 %v1051
        %v1102 = vunpack.c.l.b16 %v1052
        %v1103 = vunpack.c.l.b16 %v1053
        %v1104 = vunpack.c.l.b16 %v1054
        %v1105 = vunpack.c.l.b16 %v1055
        %v1106 = vunpack.c.l.b16 %v1056
        %v1107 = vunpack.c.l.b16 %v1057
        %v1108 = vunpack.c.l.b16 %v1058
        %v1109 = vunpack.c.l.b16 %v1059
        %v1110 = vunpack.c.l.b16 %v1060
        %v1111 = vunpack.c.l.b16 %v1061
        %v1112 = vpack.c.b16 %v1097, %v1096
        %v1113 = vpack.c.b16 %v1099, %v1098
        %v1114 = vpack.c.b16 %v1101, %v1100
        %v1115 = vpack.c.b16 %v1103, %v1102
        %v1116 = vpack.c.b16 %v1105, %v1104
        %v1117 = vpack.c.b16 %v1107, %v1106
        %v1118 = vpack.c.b16 %v1109, %v1108
        %v1119 = vpack.c.b16 %v1111, %v1110
        %1128 = vmatpush.bf16.msra.mxu0 %v1119
        %1129 = vmatpush.bf16.msra.mxu0 %v1118
        %1130 = vmatpush.bf16.msra.mxu0 %v1117
        %1131 = vmatpush.bf16.msra.mxu0 %v1116
        %1132 = vmatpush.bf16.msra.mxu0 %v1115
        %1133 = vmatpush.bf16.msra.mxu0 %v1114
        %1134 = vmatpush.bf16.msra.mxu0 %v1113
        %1135 = vmatpush.bf16.msra.mxu0 %v1112
        %1136 = vmatmul.bf16.gmra.mxu0 %v1078
        %v1137 = vpop.f32.mrf.mxu0
        %v1138 = vadd.f32 %v1064, %v1137
        %v1139 = vpop.f32.mrf.mxu0
        %v1140 = vadd.f32 %v1064, %v1139
        %1141 = vdwg.mxu0
        %1142 = vst [vmem:[%s527] sm:$0xff] %v1138
        %1143 = vst [vmem:[%s527 + $0x8] sm:$0xff] %v1140
        %s1144 = sand.u32 %s279, 1
        %s1145 = scalar_lea.sflag [#allocation5], %s1144
        %s1146 = sand.u32 %s279, 1
        %s1147 = smul.addr %s1146, 16
        %s1148 = scalar_lea.vmem [#allocation14], %s1147
        // Predicated region
        $region81: #{tpu_custom_call.1} parent=55 // pred_check
          %p1149 = pneg %p289
        $region82: #{tpu_custom_call.1} parent=55 // pred_check_branch
          %1151 = sbr.rel (%p1149) target = $region84
        $region83: #{tpu_custom_call.1} parent=55 // pred_region
          %s1152 = smul.u32 2, %s36
          %1154 = vsyncadd %s1145, 0
          %s1155 = smul.addr %s35, 2
          %s1156 = sadd.s32 %s1152, %s1155
          %s1157 = smul.addr %s1156, 8
          %s1158 = scalar_lea.hbm %s9, %s1157
          %s1159 = sshll.u32 %s1148, 4
          %s1160 = int_to_ptr.vmem [resolvable:$true] %s1159
          %s1161 = sshll.u32 %s1158, 4
          %s1162 = int_to_ptr.hbm [resolvable:$true] %s1161
          %1167 = dma.vmem_to_hbm [thread:$0]  %s1160, 256, %s1162, %s1145, 128, 128, 8
        $region84: #{tpu_custom_call.1} parent=55 // pred_fallthru
          _
      $region56: #{tpu_custom_call.1} parent=5 // pred_fallthru
        _
      %p1168 = scmp.le.s32.totalorder 2, %s26
      // Predicated region
      $region85: #{tpu_custom_call.1} parent=5 // pred_check
        %p1169 = pneg %p1168
      $region86: #{tpu_custom_call.1} parent=5 // pred_check_branch
        %1171 = sbr.rel (%p1169) target = $region88
      $region87: #{tpu_custom_call.1} parent=5 // pred_region
        %s1172 = ssub.s32 %s26, 2
        // Predicated region
        $region89: #{tpu_custom_call.1} parent=87 // pred_check
          %p1173 = pneg %p295
        $region90: #{tpu_custom_call.1} parent=87 // pred_check_branch
          %1175 = sbr.rel (%p1173) target = $region92
        $region91: #{tpu_custom_call.1} parent=87 // pred_region
          %s1176 = sand.u32 %s280, 1
          %s1177 = scalar_lea.sflag [#allocation5], %s1176
          %s1178 = sand.u32 %s280, 1
          %s1179 = smul.addr %s1178, 16
          %s1180 = scalar_lea.vmem [#allocation14], %s1179
          %1182 = dma.done %s1177, 256
        $region92: #{tpu_custom_call.1} parent=87 // pred_fallthru
          _
      $region88: #{tpu_custom_call.1} parent=5 // pred_fallthru
        _
    $region6: #{tpu_custom_call.1} parent=1 // loop_footer
      %s30 = sadd.s32 1, %s26
    $region7: #{tpu_custom_call.1} parent=1 // loop_footer_branch
      %25 = sbr.rel target = $region3
    $region8: #{tpu_custom_call.1} parent=1 // loop_exit
      _
    %1183 = vsyncpa [#allocation4], 1
    %s1184 = scalar_lea.sflag [#allocation4], 1
    %1185 = vsyncpa %s1184, 1
    %1186 = vsyncpa [#allocation7], 1
    %s1187 = scalar_lea.sflag [#allocation7], 1
    %1188 = vsyncpa %s1187, 1
    %1189 = vsyncpa [#allocation10], 1
    %1190 = vsyncpa [#allocation13], 1
    %1191 = vsyncpa [#allocation5], 1
    %s1192 = scalar_lea.sflag [#allocation5], 1
    %1193 = vsyncpa %s1192, 1

</llo_original>
